<compile_context>
chip_gen: v7x
topology: tpu7x:2x2x1
jax: 0.10.0
libtpu: 0.0.40
codegen_flags: <defaults>
</compile_context>

<pallas_src>
import functools
import math
import numpy as np
import jax
import jax.numpy as jnp
from jax.experimental import pallas as pl
from jax.experimental.pallas import tpu as pltpu

LN_EPS = 1e-5  # torch.nn.LayerNorm default


# ----------------------------- in-kernel helpers -----------------------------

def _layernorm(x, w, b):
    mu = jnp.mean(x, axis=-1, keepdims=True)
    var = jnp.mean((x - mu) ** 2, axis=-1, keepdims=True)
    return (x - mu) * jax.lax.rsqrt(var + LN_EPS) * w + b


_SQRT_2_OVER_PI = 0.7978845608028654


def _gelu_tanh(x):
    # tanh-form GELU: tanh lowers to the EUP slot instead of a VALU erf polynomial.
    # (Diverges from torch's exact-erf GELU by <~3e-3 abs; covered by the test tolerance.)
    return 0.5 * x * (1.0 + jnp.tanh(_SQRT_2_OVER_PI * (x + 0.044715 * x * x * x)))


# --------------------------------- kernels -----------------------------------

def _block_kernel(x_ref, cbias, rmask, lmask, lmask_inv,
                  ln1w, ln1b, wqkv, bqkv, wo, bo, tw,
                  ln2w, ln2b, w1, b1, w2, b2, out_ref):
    T, C = x_ref.shape[1], x_ref.shape[2]
    H = tw.shape[0]
    hs = C // H
    bf16 = jnp.bfloat16

    x = x_ref[0]                                     # (T, C) f32 residual stream

    # ---- causal self-attention with time_shift / time_weight ----
    h = _layernorm(x, ln1w[...], ln1b[...])
    # time_shift: shifted[t] = h[t-1], shifted[0] = 0; keep first C//2 channels shifted,
    # rest unshifted.  All masks precomputed host-side (no in-kernel iota/compare).
    rolled = pltpu.roll(h, shift=1, axis=0)
    xm = (rolled * rmask[...]) * lmask[...] + h * lmask_inv[...]

    # fused QKV projection: single MXU pass over a 3C-wide N dim, bf16 in / f32 accum.
    # 1/sqrt(hs) is pre-folded into the Q slice of wqkv/bqkv at pack time.
    qkv = jnp.dot(xm.astype(bf16), wqkv[...],
                  preferred_element_type=jnp.float32) + bqkv[...]
    q, k, v = qkv[:, :C], qkv[:, C:2 * C], qkv[:, 2 * C:]

    # head-major (H, T, hs) views; one batched matmul per attention stage.
    # TODO(synk): replace with the transposed-activation layout (no lane relayouts).
    def heads(z):
        return jnp.stack([z[:, i * hs:(i + 1) * hs] for i in range(H)], axis=0)

    qh = heads(q).astype(bf16)
    kh = heads(k).astype(bf16)
    vh = heads(v).astype(bf16)

    att = jax.lax.dot_general(qh, kh, (((2,), (2,)), ((0,), (0,))),
                              preferred_element_type=jnp.float32)      # (H, T, T) f32
    att = att + cbias[...]                                             # additive causal mask
    att = att - jnp.max(att, axis=-1, keepdims=True)
    att = jnp.exp(att)                                                 # reuse score buffer
    p = (att * pl.reciprocal(jnp.sum(att, axis=-1, keepdims=True), approx=True)).astype(bf16)
    p = p * tw[...]                                                    # bf16 learned time weighting

    yh = jax.lax.dot_general(p, vh, (((2,), (1,)), ((0,), (0,))),
                             preferred_element_type=jnp.float32)       # (H, T, hs)
    # full-width (T, C) merge in registers (no narrow masked stores)
    y = jnp.concatenate([yh[i] for i in range(H)], axis=-1)

    y = jnp.dot(y.astype(bf16), wo[...], preferred_element_type=jnp.float32) + bo[...]
    x = x + y                                        # residual (dropouts = identity in eval)

    # ---- MLP ----
    h2 = _layernorm(x, ln2w[...], ln2b[...])
    m = jnp.dot(h2.astype(bf16), w1[...], preferred_element_type=jnp.float32) + b1[...]
    m = _gelu_tanh(m)
    m = jnp.dot(m.astype(bf16), w2[...], preferred_element_type=jnp.float32) + b2[...]
    out_ref[0] = x + m


def _head_kernel(x_ref, lnw, lnb, wh_ref, out_ref):
    # NOTE: the final LayerNorm is recomputed per vocab tile j (redundant but negligible
    # relative to the (T, TILE_V) matmul at TILE_V >= 128).
    x = _layernorm(x_ref[0], lnw[...], lnb[...])
    out_ref[0] = jnp.dot(x.astype(jnp.bfloat16), wh_ref[...],
                         preferred_element_type=jnp.float32).astype(out_ref.dtype)


# --------------------------- VMEM / tiling heuristics --------------------------

def _physical_vmem_bytes():
    try:
        return int(pltpu.get_tpu_info().vmem_capacity_bytes)
    except Exception:
        return 64 * 1024 * 1024   # conservative (v7x per-core) fallback


def _vmem_limit_kwargs(est_bytes):
    """Generation-aware scoped-VMEM override: raise whenever the estimated live set exceeds
    the smallest per-gen scoped default (16 MiB on v5e); cap below the physical VMEM of the
    running generation with >=12 MiB headroom for compiler/internal scratch."""
    need = int(est_bytes)
    if need <= 16 * 1024 * 1024:
        return {}
    phys = _physical_vmem_bytes()
    ceiling = max(32 * 1024 * 1024, phys - 12 * 1024 * 1024)
    return {"vmem_limit_bytes": int(min(max(need, 32 * 1024 * 1024), ceiling))}


def _block_vmem_estimate(T, C, H, args):
    w_bytes = sum(int(a.size) * a.dtype.itemsize for a in args)       # single-buffered weights/masks
    act = 4 * T * C * 4                                               # x in/out tiles (pipelined)
    qkv = T * 3 * C * 4 + 3 * T * C * 2                               # f32 qkv + bf16 head copies
    soft = H * T * T * 4 + 2 * H * T * T * 2                          # one f32 score + bf16 probs
    mlp = T * 4 * C * 4 + T * 4 * C * 2                               # f32 hidden + bf16 copy
    return int(1.25 * (w_bytes + act + qkv + soft + mlp))


def _pick_tile_v(V, T, C):
    """Largest lane-dense vocab tile whose per-step buffers fit ~1/4 of this generation's VMEM."""
    budget = _physical_vmem_bytes() // 4
    v_cap = max(128, pl.cdiv(V, 128) * 128)
    for cand in (2048, 1024, 512, 256, 128):
        step = 2 * C * cand * 2 + 2 * T * cand * 2 + T * cand * 4 + 2 * T * C * 4
        if cand <= v_cap and step <= budget:
            return cand
    return 128


# --------------------------------- wrappers ----------------------------------

def _const_spec(a, grid_rank):
    """Full-array spec with a constant index map; single-buffered (Buffered(1)) since the
    block never changes across the grid -> no double-buffered copy of the weights."""
    nd = a.ndim
    if grid_rank == 1:
        imap = lambda b, _n=nd: (0,) * _n
    else:
        imap = lambda b, j, _n=nd: (0,) * _n
    return pl.BlockSpec(a.shape, imap, pipeline_mode=pl.Buffered(1))


def run_block(x, shared, wargs):
    B, T, C = x.shape
    H = wargs[6].shape[0]                                 # time_w: (H, T, T)
    args = list(shared) + list(wargs)
    est = _block_vmem_estimate(T, C, H, args)
    return pl.pallas_call(
        _block_kernel,
        out_shape=jax.ShapeDtypeStruct((B, T, C), jnp.float32),
        grid=(B,),
        in_specs=[pl.BlockSpec((1, T, C), lambda b: (b, 0, 0))]
                 + [_const_spec(a, 1) for a in args],
        out_specs=pl.BlockSpec((1, T, C), lambda b: (b, 0, 0)),
        input_output_aliases={0: 0},                      # residual stream updated in place
        compiler_params=pltpu.CompilerParams(
            dimension_semantics=("parallel",), **_vmem_limit_kwargs(est)),
    )(x, *args)


def run_head(x, head, tile_v):
    B, T, C = x.shape
    wh = head['w_head']                                   # already padded + bf16 (pack_params)
    Vp = wh.shape[1]
    nv = Vp // tile_v
    est = int(1.25 * (2 * T * C * 4 + 2 * C * tile_v * 2 + 2 * T * tile_v * 2
                      + T * tile_v * 4 + 2 * C * 4))
    return pl.pallas_call(
        _head_kernel,
        out_shape=jax.ShapeDtypeStruct((B, T, Vp), jnp.bfloat16),   # bf16 logits: half writeback
        grid=(B, nv),
        in_specs=[pl.BlockSpec((1, T, C), lambda b, j: (b, 0, 0)),
                  _const_spec(head['lnf_w'], 2),
                  _const_spec(head['lnf_b'], 2),
                  pl.BlockSpec((C, tile_v), lambda b, j: (0, j))],
        out_specs=pl.BlockSpec((1, T, tile_v), lambda b, j: (b, 0, j)),
        compiler_params=pltpu.CompilerParams(
            dimension_semantics=("parallel", "parallel"), **_vmem_limit_kwargs(est)),
    )(x, head['lnf_w'], head['lnf_b'], wh)


def pack_params(params, T):
    """One-time host-side packing: fused QKV weight/bias with 1/sqrt(hs) folded into the Q
    slice, bf16 matmul weights, bf16 time_w cropped to T, precomputed mask constants, and the
    padded bf16 LM-head weight.  Returns (packed_pytree, tile_v)."""
    C = params['tok_emb'].shape[1]
    H = params['blocks'][0]['time_w'].shape[0]
    bf16 = jnp.bfloat16
    scale = 1.0 / math.sqrt(C // H)

    # shared static constants (hoisted out of the kernel hot path)
    cbias = jnp.where(jnp.tril(jnp.ones((T, T), bool)), 0.0, -1e30).astype(jnp.float32)
    rmask = jnp.ones((T, 1), jnp.float32).at[0, 0].set(0.0)
    lmask = (jnp.arange(C)[None, :] < C // 2).astype(jnp.float32)
    shared = [cbias, rmask, lmask, 1.0 - lmask]

    blocks = []
    for blk in params['blocks']:
        wqkv = jnp.concatenate([blk['wq'] * scale, blk['wk'], blk['wv']], axis=1).astype(bf16)
        bqkv = jnp.concatenate([blk['bq'] * scale, blk['bk'], blk['bv']], axis=1)
        blocks.append([blk['ln1_w'], blk['ln1_b'], wqkv, bqkv,
                       blk['wo'].astype(bf16), blk['bo'],
                       blk['time_w'][:, :T, :T].astype(bf16),   # bf16: halves VMEM + DMA
                       blk['ln2_w'], blk['ln2_b'],
                       blk['w1'].astype(bf16), blk['b1'],
                       blk['w2'].astype(bf16), blk['b2']])

    wh = params['w_head']
    V = wh.shape[1]
    tile_v = _pick_tile_v(V, T, C)
    Vp = pl.cdiv(V, tile_v) * tile_v
    if Vp != V:
        wh = jnp.pad(wh, ((0, 0), (0, Vp - V)))          # zero-pad vocab to lane multiple
    head = {'lnf_w': params['lnf_w'], 'lnf_b': params['lnf_b'], 'w_head': wh.astype(bf16)}

    packed = {'tok_emb': params['tok_emb'], 'pos_emb': params['pos_emb'],
              'shared': shared, 'blocks': blocks, 'head': head}
    return packed, tile_v


@functools.partial(jax.jit, static_argnames=("tile_v", "vocab"))
def gpt_forward(idx, packed, *, tile_v, vocab):
    """GPT.forward(idx, targets=None) -> logits (bf16, dropout = eval identity).
    `packed` must come from pack_params with the same sequence length T."""
    T = idx.shape[1]
    x = packed['tok_emb'][idx] + packed['pos_emb'][:, :T, :]   # embedding gather = glue
    for wargs in packed['blocks']:
        x = run_block(x, packed['shared'], wargs)
    return run_head(x, packed['head'], tile_v)[..., :vocab]


# ------------------------------ parameter init --------------------------------

def init_params(key, vocab_size, block_size, n_layer, n_head, n_embd):
    # matches GPT._init_weights: Linear/Embedding ~ N(0, 0.02), biases 0,
    # LayerNorm weight 1 / bias 0; pos_emb zeros; time_weight ones.
    def nrm(k, shape):
        return 0.02 * jax.random.normal(k, shape, jnp.float32)

    keys = jax.random.split(key, 2 + n_layer)
    C = n_embd
    params = {
        'tok_emb': nrm(keys[0], (vocab_size, C)),
        'pos_emb': jnp.zeros((1, block_size, C), jnp.float32),
        'lnf_w': jnp.ones((1, C), jnp.float32),
        'lnf_b': jnp.zeros((1, C), jnp.float32),
        'w_head': nrm(keys[1], (C, vocab_size)),
        'blocks': [],
    }
    for li in range(n_layer):
        ks = jax.random.split(keys[2 + li], 6)
        blk = {
            'ln1_w': jnp.ones((1, C), jnp.float32), 'ln1_b': jnp.zeros((1, C), jnp.float32),
            'wq': nrm(ks[0], (C, C)), 'bq': jnp.zeros((1, C), jnp.float32),
            'wk': nrm(ks[1], (C, C)), 'bk': jnp.zeros((1, C), jnp.float32),
            'wv': nrm(ks[2], (C, C)), 'bv': jnp.zeros((1, C), jnp.float32),
            'wo': nrm(ks[3], (C, C)), 'bo': jnp.zeros((1, C), jnp.float32),
            'time_w': jnp.ones((n_head, block_size, block_size), jnp.float32),
            'ln2_w': jnp.ones((1, C), jnp.float32), 'ln2_b': jnp.zeros((1, C), jnp.float32),
            'w1': nrm(ks[4], (C, 4 * C)), 'b1': jnp.zeros((1, 4 * C), jnp.float32),
            'w2': nrm(ks[5], (4 * C, C)), 'b2': jnp.zeros((1, C), jnp.float32),
        }
        params['blocks'].append(blk)
    return params


# --------------------------- pure-JAX reference --------------------------------

def _ref_ln(x, w, b):
    mu = x.mean(-1, keepdims=True)
    var = ((x - mu) ** 2).mean(-1, keepdims=True)
    return (x - mu) / jnp.sqrt(var + LN_EPS) * w + b


def ref_forward(idx, params):
    PREC = jax.lax.Precision.HIGHEST
    B, T = idx.shape
    x = params['tok_emb'][idx] + params['pos_emb'][:, :T, :]
    for blk in params['blocks']:
        C = x.shape[-1]
        H = blk['time_w'].shape[0]
        hs = C // H
        h = _ref_ln(x, blk['ln1_w'], blk['ln1_b'])
        shifted = jnp.concatenate([jnp.zeros((B, 1, C), jnp.float32), h[:, :-1, :]], axis=1)
        xm = jnp.concatenate([shifted[..., :C // 2], h[..., C // 2:]], axis=-1)
        q = (jnp.matmul(xm, blk['wq'], precision=PREC) + blk['bq']).reshape(B, T, H, hs).transpose(0, 2, 1, 3)
        k = (jnp.matmul(xm, blk['wk'], precision=PREC) + blk['bk']).reshape(B, T, H, hs).transpose(0, 2, 1, 3)
        v = (jnp.matmul(xm, blk['wv'], precision=PREC) + blk['bv']).reshape(B, T, H, hs).transpose(0, 2, 1, 3)
        att = jnp.einsum('bhqd,bhkd->bhqk', q, k, precision=PREC) / math.sqrt(hs)
        mask = jnp.tril(jnp.ones((T, T), bool))
        att = jnp.where(mask, att, -jnp.inf)
        att = jax.nn.softmax(att, axis=-1)
        att = att * blk['time_w'][None, :, :T, :T]
        y = jnp.einsum('bhqk,bhkd->bhqd', att, v, precision=PREC)
        y = y.transpose(0, 2, 1, 3).reshape(B, T, C)
        x = x + jnp.matmul(y, blk['wo'], precision=PREC) + blk['bo']
        h2 = _ref_ln(x, blk['ln2_w'], blk['ln2_b'])
        m = jnp.matmul(h2, blk['w1'], precision=PREC) + blk['b1']
        m = 0.5 * m * (1.0 + jax.scipy.special.erf(m / math.sqrt(2.0)))
        x = x + jnp.matmul(m, blk['w2'], precision=PREC) + blk['b2']
    x = _ref_ln(x, params['lnf_w'], params['lnf_b'])
    return jnp.matmul(x, params['w_head'], precision=PREC)


# ----------------------------------- main --------------------------------------

if __name__ == "__main__":
    vocab_size, block_size_cfg, n_layer, n_head, n_embd = 65, 8, 2, 4, 64
    B, T = 2, 8

    key = jax.random.PRNGKey(0)
    pkey, ikey = jax.random.split(key)
    params = init_params(pkey, vocab_size, block_size_cfg, n_layer, n_head, n_embd)
    idx = jax.random.randint(ikey, (B, T), 0, vocab_size, dtype=jnp.int32)

    packed, tile_v = pack_params(params, T)        # one-time pack (not in the per-call path)
    logits = gpt_forward(idx, packed, tile_v=tile_v, vocab=vocab_size)
    logits = jax.block_until_ready(logits)
    assert logits.shape == (B, T, vocab_size)

    # Kernel uses bf16 matmul inputs / bf16 logits (f32 accumulation), tanh GELU and an
    # approx softmax reciprocal; reference is full f32/HIGHEST with exact erf GELU, so the
    # tolerance reflects those documented precision trade-offs.
    ref = ref_forward(idx, params)
    np.testing.assert_allclose(np.asarray(logits.astype(jnp.float32)),
                               np.asarray(ref), rtol=2e-2, atol=1e-2)

    # TODO(synk): loss path (targets + cross_entropy) and the sampling loop are host-side
    # glue, not part of the kernel forward.
    print("KERNEL_OK")
</pallas_src>

<mosaic_0001>
module attributes {stable_mosaic.version = 11 : i64} {
  func.func @_head_kernel(%arg0: i32, %arg1: i32, %arg2: memref<1x8x64xf32, #tpu.memory_space<vmem>>, %arg3: memref<1x64xf32, #tpu.memory_space<vmem>>, %arg4: memref<1x64xf32, #tpu.memory_space<vmem>>, %arg5: memref<64x128xbf16, #tpu.memory_space<vmem>>, %arg6: memref<1x8x128xbf16, #tpu.memory_space<vmem>>) attributes {dimension_semantics = [#tpu.dimension_semantics<parallel>, #tpu.dimension_semantics<parallel>], iteration_bounds = array<i64: 2, 1>, scalar_prefetch = 0 : i64, scratch_operands = 0 : i64, tpu.core_type = #tpu.core_type<tc>, window_params = [{transform_indices = @transform_0, window_bounds = array<i64: 1, 8, 64>}, {pipeline_mode = #tpu.pipeline_mode<synchronous>, transform_indices = @transform_1, window_bounds = array<i64: 1, 64>}, {pipeline_mode = #tpu.pipeline_mode<synchronous>, transform_indices = @transform_2, window_bounds = array<i64: 1, 64>}, {transform_indices = @transform_3, window_bounds = array<i64: 64, 128>}, {transform_indices = @transform_4, window_bounds = array<i64: 1, 8, 128>}]} {
    %c0 = arith.constant 0 : index
    %c0_0 = arith.constant 0 : index
    %c0_1 = arith.constant 0 : index
    %0 = vector.load %arg2[%c0, %c0_0, %c0_1] : memref<1x8x64xf32, #tpu.memory_space<vmem>>, vector<1x8x64xf32>
    %1 = vector.shape_cast %0 : vector<1x8x64xf32> to vector<8x64xf32>
    %c0_2 = arith.constant 0 : index
    %c0_3 = arith.constant 0 : index
    %2 = vector.load %arg3[%c0_2, %c0_3] : memref<1x64xf32, #tpu.memory_space<vmem>>, vector<1x64xf32>
    %c0_4 = arith.constant 0 : index
    %c0_5 = arith.constant 0 : index
    %3 = vector.load %arg4[%c0_4, %c0_5] : memref<1x64xf32, #tpu.memory_space<vmem>>, vector<1x64xf32>
    %cst = arith.constant dense<0.000000e+00> : vector<8xf32>
    %4 = vector.multi_reduction <add>, %1, %cst [1] : vector<8x64xf32> to vector<8xf32>
    %5 = vector.shape_cast %4 : vector<8xf32> to vector<8x1xf32>
    %cst_6 = arith.constant 6.400000e+01 : f32
    %6 = vector.broadcast %cst_6 : f32 to vector<8x1xf32>
    %7 = arith.divf %5, %6 : vector<8x1xf32>
    %8 = vector.broadcast %7 : vector<8x1xf32> to vector<8x64xf32>
    %9 = arith.subf %1, %8 : vector<8x64xf32>
    %10 = arith.mulf %9, %9 : vector<8x64xf32>
    %cst_7 = arith.constant dense<0.000000e+00> : vector<8xf32>
    %11 = vector.multi_reduction <add>, %10, %cst_7 [1] : vector<8x64xf32> to vector<8xf32>
    %12 = vector.shape_cast %11 : vector<8xf32> to vector<8x1xf32>
    %cst_8 = arith.constant 6.400000e+01 : f32
    %13 = vector.broadcast %cst_8 : f32 to vector<8x1xf32>
    %14 = arith.divf %12, %13 : vector<8x1xf32>
    %15 = vector.broadcast %7 : vector<8x1xf32> to vector<8x64xf32>
    %16 = arith.subf %1, %15 : vector<8x64xf32>
    %cst_9 = arith.constant 9.99999974E-6 : f32
    %17 = vector.broadcast %cst_9 : f32 to vector<8x1xf32>
    %18 = arith.addf %14, %17 : vector<8x1xf32>
    %19 = math.rsqrt %18 : vector<8x1xf32>
    %20 = vector.broadcast %19 : vector<8x1xf32> to vector<8x64xf32>
    %21 = arith.mulf %16, %20 : vector<8x64xf32>
    %22 = vector.broadcast %2 : vector<1x64xf32> to vector<8x64xf32>
    %23 = arith.mulf %21, %22 : vector<8x64xf32>
    %24 = vector.broadcast %3 : vector<1x64xf32> to vector<8x64xf32>
    %25 = arith.addf %23, %24 : vector<8x64xf32>
    %26 = arith.truncf %25 : vector<8x64xf32> to vector<8x64xbf16>
    %c0_10 = arith.constant 0 : index
    %c0_11 = arith.constant 0 : index
    %27 = vector.load %arg5[%c0_10, %c0_11] : memref<64x128xbf16, #tpu.memory_space<vmem>>, vector<64x128xbf16>
    %cst_12 = arith.constant dense<0.000000e+00> : vector<8x128xf32>
    %28 = tpu.matmul %26, %27, %cst_12 {dimension_numbers = #tpu.dot_dimension_numbers<[1], [0], [0], [1], [0, 0, 1, 1], [], []>} : vector<8x64xbf16>, vector<64x128xbf16>, vector<8x128xf32> -> vector<8x128xf32>
    %29 = arith.truncf %28 : vector<8x128xf32> to vector<8x128xbf16>
    %c0_13 = arith.constant 0 : index
    %c0_14 = arith.constant 0 : index
    %c0_15 = arith.constant 0 : index
    %30 = vector.load %arg6[%c0_13, %c0_14, %c0_15] : memref<1x8x128xbf16, #tpu.memory_space<vmem>>, vector<1x8x128xbf16>
    %31 = vector.shape_cast %30 : vector<1x8x128xbf16> to vector<8x128xbf16>
    %32 = vector.shape_cast %29 : vector<8x128xbf16> to vector<1x8x128xbf16>
    tpu.vector_store %arg6[%c0_13, %c0_14, %c0_15], %32 {strides = array<i32>} : memref<1x8x128xbf16, #tpu.memory_space<vmem>>, vector<1x8x128xbf16>,
    return
  }
  func.func @transform_0(%arg0: i32, %arg1: i32) -> (i32, i32, i32) {
    %c0_i32 = arith.constant 0 : i32
    %c0_i32_0 = arith.constant 0 : i32
    %c0_i32_1 = arith.constant 0 : i32
    return %arg0, %c0_i32, %c0_i32_0 : i32, i32, i32
  }
  func.func @transform_1(%arg0: i32, %arg1: i32) -> (i32, i32) {
    %c0_i32 = arith.constant 0 : i32
    %c0_i32_0 = arith.constant 0 : i32
    %c0_i32_1 = arith.constant 0 : i32
    return %c0_i32, %c0_i32_0 : i32, i32
  }
  func.func @transform_2(%arg0: i32, %arg1: i32) -> (i32, i32) {
    %c0_i32 = arith.constant 0 : i32
    %c0_i32_0 = arith.constant 0 : i32
    %c0_i32_1 = arith.constant 0 : i32
    return %c0_i32, %c0_i32_0 : i32, i32
  }
  func.func @transform_3(%arg0: i32, %arg1: i32) -> (i32, i32) {
    %c0_i32 = arith.constant 0 : i32
    %c0_i32_0 = arith.constant 0 : i32
    return %c0_i32, %arg1 : i32, i32
  }
  func.func @transform_4(%arg0: i32, %arg1: i32) -> (i32, i32, i32) {
    %c0_i32 = arith.constant 0 : i32
    %c0_i32_0 = arith.constant 0 : i32
    return %arg0, %c0_i32, %arg1 : i32, i32, i32
  }
}

module attributes {stable_mosaic.version = 11 : i64} {
  func.func @_block_kernel(%arg0: i32, %arg1: memref<1x8x64xf32, #tpu.memory_space<vmem>>, %arg2: memref<8x8xf32, #tpu.memory_space<vmem>>, %arg3: memref<8x1xf32, #tpu.memory_space<vmem>>, %arg4: memref<1x64xf32, #tpu.memory_space<vmem>>, %arg5: memref<1x64xf32, #tpu.memory_space<vmem>>, %arg6: memref<1x64xf32, #tpu.memory_space<vmem>>, %arg7: memref<1x64xf32, #tpu.memory_space<vmem>>, %arg8: memref<64x192xbf16, #tpu.memory_space<vmem>>, %arg9: memref<1x192xf32, #tpu.memory_space<vmem>>, %arg10: memref<64x64xbf16, #tpu.memory_space<vmem>>, %arg11: memref<1x64xf32, #tpu.memory_space<vmem>>, %arg12: memref<4x8x8xbf16, #tpu.memory_space<vmem>>, %arg13: memref<1x64xf32, #tpu.memory_space<vmem>>, %arg14: memref<1x64xf32, #tpu.memory_space<vmem>>, %arg15: memref<64x256xbf16, #tpu.memory_space<vmem>>, %arg16: memref<1x256xf32, #tpu.memory_space<vmem>>, %arg17: memref<256x64xbf16, #tpu.memory_space<vmem>>, %arg18: memref<1x64xf32, #tpu.memory_space<vmem>>, %arg19: memref<1x8x64xf32, #tpu.memory_space<vmem>>) attributes {dimension_semantics = [#tpu.dimension_semantics<parallel>], iteration_bounds = array<i64: 2>, scalar_prefetch = 0 : i64, scratch_operands = 0 : i64, tpu.core_type = #tpu.core_type<tc>, window_params = [{transform_indices = @transform_0, window_bounds = array<i64: 1, 8, 64>}, {pipeline_mode = #tpu.pipeline_mode<synchronous>, transform_indices = @transform_1, window_bounds = array<i64: 8, 8>}, {pipeline_mode = #tpu.pipeline_mode<synchronous>, transform_indices = @transform_2, window_bounds = array<i64: 8, 1>}, {pipeline_mode = #tpu.pipeline_mode<synchronous>, transform_indices = @transform_3, window_bounds = array<i64: 1, 64>}, {pipeline_mode = #tpu.pipeline_mode<synchronous>, transform_indices = @transform_4, window_bounds = array<i64: 1, 64>}, {pipeline_mode = #tpu.pipeline_mode<synchronous>, transform_indices = @transform_5, window_bounds = array<i64: 1, 64>}, {pipeline_mode = #tpu.pipeline_mode<synchronous>, transform_indices = @transform_6, window_bounds = array<i64: 1, 64>}, {pipeline_mode = #tpu.pipeline_mode<synchronous>, transform_indices = @transform_7, window_bounds = array<i64: 64, 192>}, {pipeline_mode = #tpu.pipeline_mode<synchronous>, transform_indices = @transform_8, window_bounds = array<i64: 1, 192>}, {pipeline_mode = #tpu.pipeline_mode<synchronous>, transform_indices = @transform_9, window_bounds = array<i64: 64, 64>}, {pipeline_mode = #tpu.pipeline_mode<synchronous>, transform_indices = @transform_10, window_bounds = array<i64: 1, 64>}, {pipeline_mode = #tpu.pipeline_mode<synchronous>, transform_indices = @transform_11, window_bounds = array<i64: 4, 8, 8>}, {pipeline_mode = #tpu.pipeline_mode<synchronous>, transform_indices = @transform_12, window_bounds = array<i64: 1, 64>}, {pipeline_mode = #tpu.pipeline_mode<synchronous>, transform_indices = @transform_13, window_bounds = array<i64: 1, 64>}, {pipeline_mode = #tpu.pipeline_mode<synchronous>, transform_indices = @transform_14, window_bounds = array<i64: 64, 256>}, {pipeline_mode = #tpu.pipeline_mode<synchronous>, transform_indices = @transform_15, window_bounds = array<i64: 1, 256>}, {pipeline_mode = #tpu.pipeline_mode<synchronous>, transform_indices = @transform_16, window_bounds = array<i64: 256, 64>}, {pipeline_mode = #tpu.pipeline_mode<synchronous>, transform_indices = @transform_17, window_bounds = array<i64: 1, 64>}, {transform_indices = @transform_18, window_bounds = array<i64: 1, 8, 64>}]} {
    %c0 = arith.constant 0 : index
    %c0_0 = arith.constant 0 : index
    %c0_1 = arith.constant 0 : index
    %0 = vector.load %arg1[%c0, %c0_0, %c0_1] : memref<1x8x64xf32, #tpu.memory_space<vmem>>, vector<1x8x64xf32>
    %1 = vector.shape_cast %0 : vector<1x8x64xf32> to vector<8x64xf32>
    %c0_2 = arith.constant 0 : index
    %c0_3 = arith.constant 0 : index
    %2 = vector.load %arg6[%c0_2, %c0_3] : memref<1x64xf32, #tpu.memory_space<vmem>>, vector<1x64xf32>
    %c0_4 = arith.constant 0 : index
    %c0_5 = arith.constant 0 : index
    %3 = vector.load %arg7[%c0_4, %c0_5] : memref<1x64xf32, #tpu.memory_space<vmem>>, vector<1x64xf32>
    %cst = arith.constant dense<0.000000e+00> : vector<8xf32>
    %4 = vector.multi_reduction <add>, %1, %cst [1] : vector<8x64xf32> to vector<8xf32>
    %5 = vector.shape_cast %4 : vector<8xf32> to vector<8x1xf32>
    %cst_6 = arith.constant 6.400000e+01 : f32
    %6 = vector.broadcast %cst_6 : f32 to vector<8x1xf32>
    %7 = arith.divf %5, %6 : vector<8x1xf32>
    %8 = vector.broadcast %7 : vector<8x1xf32> to vector<8x64xf32>
    %9 = arith.subf %1, %8 : vector<8x64xf32>
    %10 = arith.mulf %9, %9 : vector<8x64xf32>
    %cst_7 = arith.constant dense<0.000000e+00> : vector<8xf32>
    %11 = vector.multi_reduction <add>, %10, %cst_7 [1] : vector<8x64xf32> to vector<8xf32>
    %12 = vector.shape_cast %11 : vector<8xf32> to vector<8x1xf32>
    %cst_8 = arith.constant 6.400000e+01 : f32
    %13 = vector.broadcast %cst_8 : f32 to vector<8x1xf32>
    %14 = arith.divf %12, %13 : vector<8x1xf32>
    %15 = vector.broadcast %7 : vector<8x1xf32> to vector<8x64xf32>
    %16 = arith.subf %1, %15 : vector<8x64xf32>
    %cst_9 = arith.constant 9.99999974E-6 : f32
    %17 = vector.broadcast %cst_9 : f32 to vector<8x1xf32>
    %18 = arith.addf %14, %17 : vector<8x1xf32>
    %19 = math.rsqrt %18 : vector<8x1xf32>
    %20 = vector.broadcast %19 : vector<8x1xf32> to vector<8x64xf32>
    %21 = arith.mulf %16, %20 : vector<8x64xf32>
    %22 = vector.broadcast %2 : vector<1x64xf32> to vector<8x64xf32>
    %23 = arith.mulf %21, %22 : vector<8x64xf32>
    %24 = vector.broadcast %3 : vector<1x64xf32> to vector<8x64xf32>
    %25 = arith.addf %23, %24 : vector<8x64xf32>
    %c1_i32 = arith.constant 1 : i32
    %26 = tpu.dynamic_rotate %25 by %c1_i32 dim 0 : vector<8x64xf32>, i32 -> vector<8x64xf32>
    %c0_10 = arith.constant 0 : index
    %c0_11 = arith.constant 0 : index
    %27 = vector.load %arg3[%c0_10, %c0_11] : memref<8x1xf32, #tpu.memory_space<vmem>>, vector<8x1xf32>
    %28 = vector.broadcast %27 : vector<8x1xf32> to vector<8x64xf32>
    %29 = arith.mulf %26, %28 : vector<8x64xf32>
    %c0_12 = arith.constant 0 : index
    %c0_13 = arith.constant 0 : index
    %30 = vector.load %arg4[%c0_12, %c0_13] : memref<1x64xf32, #tpu.memory_space<vmem>>, vector<1x64xf32>
    %31 = vector.broadcast %30 : vector<1x64xf32> to vector<8x64xf32>
    %32 = arith.mulf %29, %31 : vector<8x64xf32>
    %c0_14 = arith.constant 0 : index
    %c0_15 = arith.constant 0 : index
    %33 = vector.load %arg5[%c0_14, %c0_15] : memref<1x64xf32, #tpu.memory_space<vmem>>, vector<1x64xf32>
    %34 = vector.broadcast %33 : vector<1x64xf32> to vector<8x64xf32>
    %35 = arith.mulf %25, %34 : vector<8x64xf32>
    %36 = arith.addf %32, %35 : vector<8x64xf32>
    %37 = arith.truncf %36 : vector<8x64xf32> to vector<8x64xbf16>
    %c0_16 = arith.constant 0 : index
    %c0_17 = arith.constant 0 : index
    %38 = vector.load %arg8[%c0_16, %c0_17] : memref<64x192xbf16, #tpu.memory_space<vmem>>, vector<64x192xbf16>
    %cst_18 = arith.constant dense<0.000000e+00> : vector<8x192xf32>
    %39 = tpu.matmul %37, %38, %cst_18 {dimension_numbers = #tpu.dot_dimension_numbers<[1], [0], [0], [1], [0, 0, 1, 1], [], []>} : vector<8x64xbf16>, vector<64x192xbf16>, vector<8x192xf32> -> vector<8x192xf32>
    %c0_19 = arith.constant 0 : index
    %c0_20 = arith.constant 0 : index
    %40 = vector.load %arg9[%c0_19, %c0_20] : memref<1x192xf32, #tpu.memory_space<vmem>>, vector<1x192xf32>
    %41 = vector.broadcast %40 : vector<1x192xf32> to vector<8x192xf32>
    %42 = arith.addf %39, %41 : vector<8x192xf32>
    %43 = vector.extract_strided_slice %42 {offsets = [0, 0], sizes = [8, 64], strides = [1, 1]} : vector<8x192xf32> to vector<8x64xf32>
    %44 = vector.extract_strided_slice %42 {offsets = [0, 64], sizes = [8, 64], strides = [1, 1]} : vector<8x192xf32> to vector<8x64xf32>
    %45 = vector.extract_strided_slice %42 {offsets = [0, 128], sizes = [8, 64], strides = [1, 1]} : vector<8x192xf32> to vector<8x64xf32>
    %46 = vector.extract_strided_slice %43 {offsets = [0, 0], sizes = [8, 16], strides = [1, 1]} : vector<8x64xf32> to vector<8x16xf32>
    %47 = vector.extract_strided_slice %43 {offsets = [0, 16], sizes = [8, 16], strides = [1, 1]} : vector<8x64xf32> to vector<8x16xf32>
    %48 = vector.extract_strided_slice %43 {offsets = [0, 32], sizes = [8, 16], strides = [1, 1]} : vector<8x64xf32> to vector<8x16xf32>
    %49 = vector.extract_strided_slice %43 {offsets = [0, 48], sizes = [8, 16], strides = [1, 1]} : vector<8x64xf32> to vector<8x16xf32>
    %50 = vector.shape_cast %46 : vector<8x16xf32> to vector<1x8x16xf32>
    %51 = vector.shape_cast %47 : vector<8x16xf32> to vector<1x8x16xf32>
    %52 = vector.shape_cast %48 : vector<8x16xf32> to vector<1x8x16xf32>
    %53 = vector.shape_cast %49 : vector<8x16xf32> to vector<1x8x16xf32>
    %54 = tpu.concatenate %50, %51, %52, %53 in 0 : vector<1x8x16xf32>, vector<1x8x16xf32>, vector<1x8x16xf32>, vector<1x8x16xf32> -> vector<4x8x16xf32>
    %55 = arith.truncf %54 : vector<4x8x16xf32> to vector<4x8x16xbf16>
    %56 = vector.extract_strided_slice %44 {offsets = [0, 0], sizes = [8, 16], strides = [1, 1]} : vector<8x64xf32> to vector<8x16xf32>
    %57 = vector.extract_strided_slice %44 {offsets = [0, 16], sizes = [8, 16], strides = [1, 1]} : vector<8x64xf32> to vector<8x16xf32>
    %58 = vector.extract_strided_slice %44 {offsets = [0, 32], sizes = [8, 16], strides = [1, 1]} : vector<8x64xf32> to vector<8x16xf32>
    %59 = vector.extract_strided_slice %44 {offsets = [0, 48], sizes = [8, 16], strides = [1, 1]} : vector<8x64xf32> to vector<8x16xf32>
    %60 = vector.shape_cast %56 : vector<8x16xf32> to vector<1x8x16xf32>
    %61 = vector.shape_cast %57 : vector<8x16xf32> to vector<1x8x16xf32>
    %62 = vector.shape_cast %58 : vector<8x16xf32> to vector<1x8x16xf32>
    %63 = vector.shape_cast %59 : vector<8x16xf32> to vector<1x8x16xf32>
    %64 = tpu.concatenate %60, %61, %62, %63 in 0 : vector<1x8x16xf32>, vector<1x8x16xf32>, vector<1x8x16xf32>, vector<1x8x16xf32> -> vector<4x8x16xf32>
    %65 = arith.truncf %64 : vector<4x8x16xf32> to vector<4x8x16xbf16>
    %66 = vector.extract_strided_slice %45 {offsets = [0, 0], sizes = [8, 16], strides = [1, 1]} : vector<8x64xf32> to vector<8x16xf32>
    %67 = vector.extract_strided_slice %45 {offsets = [0, 16], sizes = [8, 16], strides = [1, 1]} : vector<8x64xf32> to vector<8x16xf32>
    %68 = vector.extract_strided_slice %45 {offsets = [0, 32], sizes = [8, 16], strides = [1, 1]} : vector<8x64xf32> to vector<8x16xf32>
    %69 = vector.extract_strided_slice %45 {offsets = [0, 48], sizes = [8, 16], strides = [1, 1]} : vector<8x64xf32> to vector<8x16xf32>
    %70 = vector.shape_cast %66 : vector<8x16xf32> to vector<1x8x16xf32>
    %71 = vector.shape_cast %67 : vector<8x16xf32> to vector<1x8x16xf32>
    %72 = vector.shape_cast %68 : vector<8x16xf32> to vector<1x8x16xf32>
    %73 = vector.shape_cast %69 : vector<8x16xf32> to vector<1x8x16xf32>
    %74 = tpu.concatenate %70, %71, %72, %73 in 0 : vector<1x8x16xf32>, vector<1x8x16xf32>, vector<1x8x16xf32>, vector<1x8x16xf32> -> vector<4x8x16xf32>
    %75 = arith.truncf %74 : vector<4x8x16xf32> to vector<4x8x16xbf16>
    %cst_21 = arith.constant dense<0.000000e+00> : vector<4x8x8xf32>
    %76 = tpu.matmul %55, %65, %cst_21 {dimension_numbers = #tpu.dot_dimension_numbers<[2], [2], [1], [1], [0, 0, 0, 1, 1, 1], [0], [0]>} : vector<4x8x16xbf16>, vector<4x8x16xbf16>, vector<4x8x8xf32> -> vector<4x8x8xf32>
    %c0_22 = arith.constant 0 : index
    %c0_23 = arith.constant 0 : index
    %77 = vector.load %arg2[%c0_22, %c0_23] : memref<8x8xf32, #tpu.memory_space<vmem>>, vector<8x8xf32>
    %78 = vector.shape_cast %77 : vector<8x8xf32> to vector<1x8x8xf32>
    %79 = vector.broadcast %78 : vector<1x8x8xf32> to vector<4x8x8xf32>
    %80 = arith.addf %76, %79 : vector<4x8x8xf32>
    %cst_24 = arith.constant dense<0xFF800000> : vector<4x8xf32>
    %81 = vector.multi_reduction <maximumf>, %80, %cst_24 [2] : vector<4x8x8xf32> to vector<4x8xf32>
    %82 = vector.shape_cast %81 : vector<4x8xf32> to vector<4x8x1xf32>
    %83 = vector.broadcast %82 : vector<4x8x1xf32> to vector<4x8x8xf32>
    %84 = arith.subf %80, %83 : vector<4x8x8xf32>
    %85 = math.exp %84 : vector<4x8x8xf32>
    %cst_25 = arith.constant dense<0.000000e+00> : vector<4x8xf32>
    %86 = vector.multi_reduction <add>, %85, %cst_25 [2] : vector<4x8x8xf32> to vector<4x8xf32>
    %87 = vector.shape_cast %86 : vector<4x8xf32> to vector<4x8x1xf32>
    %88 = tpu.reciprocal %87 {approx = true} : vector<4x8x1xf32> -> vector<4x8x1xf32>
    %89 = vector.broadcast %88 : vector<4x8x1xf32> to vector<4x8x8xf32>
    %90 = arith.mulf %85, %89 : vector<4x8x8xf32>
    %91 = arith.truncf %90 : vector<4x8x8xf32> to vector<4x8x8xbf16>
    %c0_26 = arith.constant 0 : index
    %c0_27 = arith.constant 0 : index
    %c0_28 = arith.constant 0 : index
    %92 = vector.load %arg12[%c0_26, %c0_27, %c0_28] : memref<4x8x8xbf16, #tpu.memory_space<vmem>>, vector<4x8x8xbf16>
    %93 = arith.mulf %91, %92 : vector<4x8x8xbf16>
    %cst_29 = arith.constant dense<0.000000e+00> : vector<4x8x16xf32>
    %94 = tpu.matmul %93, %75, %cst_29 {dimension_numbers = #tpu.dot_dimension_numbers<[2], [1], [1], [2], [0, 0, 0, 1, 1, 2], [0], [0]>} : vector<4x8x8xbf16>, vector<4x8x16xbf16>, vector<4x8x16xf32> -> vector<4x8x16xf32>
    %95 = vector.extract_strided_slice %94 {offsets = [0, 0, 0], sizes = [1, 8, 16], strides = [1, 1, 1]} : vector<4x8x16xf32> to vector<1x8x16xf32>
    %96 = vector.shape_cast %95 : vector<1x8x16xf32> to vector<8x16xf32>
    %97 = vector.extract_strided_slice %94 {offsets = [1, 0, 0], sizes = [1, 8, 16], strides = [1, 1, 1]} : vector<4x8x16xf32> to vector<1x8x16xf32>
    %98 = vector.shape_cast %97 : vector<1x8x16xf32> to vector<8x16xf32>
    %99 = vector.extract_strided_slice %94 {offsets = [2, 0, 0], sizes = [1, 8, 16], strides = [1, 1, 1]} : vector<4x8x16xf32> to vector<1x8x16xf32>
    %100 = vector.shape_cast %99 : vector<1x8x16xf32> to vector<8x16xf32>
    %101 = vector.extract_strided_slice %94 {offsets = [3, 0, 0], sizes = [1, 8, 16], strides = [1, 1, 1]} : vector<4x8x16xf32> to vector<1x8x16xf32>
    %102 = vector.shape_cast %101 : vector<1x8x16xf32> to vector<8x16xf32>
    %103 = tpu.concatenate %96, %98, %100, %102 in 1 : vector<8x16xf32>, vector<8x16xf32>, vector<8x16xf32>, vector<8x16xf32> -> vector<8x64xf32>
    %104 = arith.truncf %103 : vector<8x64xf32> to vector<8x64xbf16>
    %c0_30 = arith.constant 0 : index
    %c0_31 = arith.constant 0 : index
    %105 = vector.load %arg10[%c0_30, %c0_31] : memref<64x64xbf16, #tpu.memory_space<vmem>>, vector<64x64xbf16>
    %cst_32 = arith.constant dense<0.000000e+00> : vector<8x64xf32>
    %106 = tpu.matmul %104, %105, %cst_32 {dimension_numbers = #tpu.dot_dimension_numbers<[1], [0], [0], [1], [0, 0, 1, 1], [], []>} : vector<8x64xbf16>, vector<64x64xbf16>, vector<8x64xf32> -> vector<8x64xf32>
    %c0_33 = arith.constant 0 : index
    %c0_34 = arith.constant 0 : index
    %107 = vector.load %arg11[%c0_33, %c0_34] : memref<1x64xf32, #tpu.memory_space<vmem>>, vector<1x64xf32>
    %108 = vector.broadcast %107 : vector<1x64xf32> to vector<8x64xf32>
    %109 = arith.addf %106, %108 : vector<8x64xf32>
    %110 = arith.addf %1, %109 : vector<8x64xf32>
    %c0_35 = arith.constant 0 : index
    %c0_36 = arith.constant 0 : index
    %111 = vector.load %arg13[%c0_35, %c0_36] : memref<1x64xf32, #tpu.memory_space<vmem>>, vector<1x64xf32>
    %c0_37 = arith.constant 0 : index
    %c0_38 = arith.constant 0 : index
    %112 = vector.load %arg14[%c0_37, %c0_38] : memref<1x64xf32, #tpu.memory_space<vmem>>, vector<1x64xf32>
    %cst_39 = arith.constant dense<0.000000e+00> : vector<8xf32>
    %113 = vector.multi_reduction <add>, %110, %cst_39 [1] : vector<8x64xf32> to vector<8xf32>
    %114 = vector.shape_cast %113 : vector<8xf32> to vector<8x1xf32>
    %cst_40 = arith.constant 6.400000e+01 : f32
    %115 = vector.broadcast %cst_40 : f32 to vector<8x1xf32>
    %116 = arith.divf %114, %115 : vector<8x1xf32>
    %117 = vector.broadcast %116 : vector<8x1xf32> to vector<8x64xf32>
    %118 = arith.subf %110, %117 : vector<8x64xf32>
    %119 = arith.mulf %118, %118 : vector<8x64xf32>
    %cst_41 = arith.constant dense<0.000000e+00> : vector<8xf32>
    %120 = vector.multi_reduction <add>, %119, %cst_41 [1] : vector<8x64xf32> to vector<8xf32>
    %121 = vector.shape_cast %120 : vector<8xf32> to vector<8x1xf32>
    %cst_42 = arith.constant 6.400000e+01 : f32
    %122 = vector.broadcast %cst_42 : f32 to vector<8x1xf32>
    %123 = arith.divf %121, %122 : vector<8x1xf32>
    %124 = vector.broadcast %116 : vector<8x1xf32> to vector<8x64xf32>
    %125 = arith.subf %110, %124 : vector<8x64xf32>
    %cst_43 = arith.constant 9.99999974E-6 : f32
    %126 = vector.broadcast %cst_43 : f32 to vector<8x1xf32>
    %127 = arith.addf %123, %126 : vector<8x1xf32>
    %128 = math.rsqrt %127 : vector<8x1xf32>
    %129 = vector.broadcast %128 : vector<8x1xf32> to vector<8x64xf32>
    %130 = arith.mulf %125, %129 : vector<8x64xf32>
    %131 = vector.broadcast %111 : vector<1x64xf32> to vector<8x64xf32>
    %132 = arith.mulf %130, %131 : vector<8x64xf32>
    %133 = vector.broadcast %112 : vector<1x64xf32> to vector<8x64xf32>
    %134 = arith.addf %132, %133 : vector<8x64xf32>
    %135 = arith.truncf %134 : vector<8x64xf32> to vector<8x64xbf16>
    %c0_44 = arith.constant 0 : index
    %c0_45 = arith.constant 0 : index
    %136 = vector.load %arg15[%c0_44, %c0_45] : memref<64x256xbf16, #tpu.memory_space<vmem>>, vector<64x256xbf16>
    %cst_46 = arith.constant dense<0.000000e+00> : vector<8x256xf32>
    %137 = tpu.matmul %135, %136, %cst_46 {dimension_numbers = #tpu.dot_dimension_numbers<[1], [0], [0], [1], [0, 0, 1, 1], [], []>} : vector<8x64xbf16>, vector<64x256xbf16>, vector<8x256xf32> -> vector<8x256xf32>
    %c0_47 = arith.constant 0 : index
    %c0_48 = arith.constant 0 : index
    %138 = vector.load %arg16[%c0_47, %c0_48] : memref<1x256xf32, #tpu.memory_space<vmem>>, vector<1x256xf32>
    %139 = vector.broadcast %138 : vector<1x256xf32> to vector<8x256xf32>
    %140 = arith.addf %137, %139 : vector<8x256xf32>
    %cst_49 = arith.constant 5.000000e-01 : f32
    %141 = vector.broadcast %cst_49 : f32 to vector<8x256xf32>
    %142 = arith.mulf %141, %140 : vector<8x256xf32>
    %cst_50 = arith.constant 4.471500e-02 : f32
    %143 = vector.broadcast %cst_50 : f32 to vector<8x256xf32>
    %144 = arith.mulf %143, %140 : vector<8x256xf32>
    %145 = arith.mulf %144, %140 : vector<8x256xf32>
    %146 = arith.mulf %145, %140 : vector<8x256xf32>
    %147 = arith.addf %140, %146 : vector<8x256xf32>
    %cst_51 = arith.constant 0.797884583 : f32
    %148 = vector.broadcast %cst_51 : f32 to vector<8x256xf32>
    %149 = arith.mulf %148, %147 : vector<8x256xf32>
    %150 = math.tanh %149 : vector<8x256xf32>
    %cst_52 = arith.constant 1.000000e+00 : f32
    %151 = vector.broadcast %cst_52 : f32 to vector<8x256xf32>
    %152 = arith.addf %151, %150 : vector<8x256xf32>
    %153 = arith.mulf %142, %152 : vector<8x256xf32>
    %154 = arith.truncf %153 : vector<8x256xf32> to vector<8x256xbf16>
    %c0_53 = arith.constant 0 : index
    %c0_54 = arith.constant 0 : index
    %155 = vector.load %arg17[%c0_53, %c0_54] : memref<256x64xbf16, #tpu.memory_space<vmem>>, vector<256x64xbf16>
    %cst_55 = arith.constant dense<0.000000e+00> : vector<8x64xf32>
    %156 = tpu.matmul %154, %155, %cst_55 {dimension_numbers = #tpu.dot_dimension_numbers<[1], [0], [0], [1], [0, 0, 1, 1], [], []>} : vector<8x256xbf16>, vector<256x64xbf16>, vector<8x64xf32> -> vector<8x64xf32>
    %c0_56 = arith.constant 0 : index
    %c0_57 = arith.constant 0 : index
    %157 = vector.load %arg18[%c0_56, %c0_57] : memref<1x64xf32, #tpu.memory_space<vmem>>, vector<1x64xf32>
    %158 = vector.broadcast %157 : vector<1x64xf32> to vector<8x64xf32>
    %159 = arith.addf %156, %158 : vector<8x64xf32>
    %160 = arith.addf %110, %159 : vector<8x64xf32>
    %c0_58 = arith.constant 0 : index
    %c0_59 = arith.constant 0 : index
    %c0_60 = arith.constant 0 : index
    %161 = vector.load %arg19[%c0_58, %c0_59, %c0_60] : memref<1x8x64xf32, #tpu.memory_space<vmem>>, vector<1x8x64xf32>
    %162 = vector.shape_cast %161 : vector<1x8x64xf32> to vector<8x64xf32>
    %163 = vector.shape_cast %160 : vector<8x64xf32> to vector<1x8x64xf32>
    tpu.vector_store %arg19[%c0_58, %c0_59, %c0_60], %163 {strides = array<i32>} : memref<1x8x64xf32, #tpu.memory_space<vmem>>, vector<1x8x64xf32>,
    return
  }
  func.func @transform_0(%arg0: i32) -> (i32, i32, i32) {
    %c0_i32 = arith.constant 0 : i32
    %c0_i32_0 = arith.constant 0 : i32
    %c0_i32_1 = arith.constant 0 : i32
    return %arg0, %c0_i32, %c0_i32_0 : i32, i32, i32
  }
  func.func @transform_1(%arg0: i32) -> (i32, i32) {
    %c0_i32 = arith.constant 0 : i32
    %c0_i32_0 = arith.constant 0 : i32
    %c0_i32_1 = arith.constant 0 : i32
    return %c0_i32, %c0_i32_0 : i32, i32
  }
  func.func @transform_2(%arg0: i32) -> (i32, i32) {
    %c0_i32 = arith.constant 0 : i32
    %c0_i32_0 = arith.constant 0 : i32
    %c0_i32_1 = arith.constant 0 : i32
    return %c0_i32, %c0_i32_0 : i32, i32
  }
  func.func @transform_3(%arg0: i32) -> (i32, i32) {
    %c0_i32 = arith.constant 0 : i32
    %c0_i32_0 = arith.constant 0 : i32
    %c0_i32_1 = arith.constant 0 : i32
    return %c0_i32, %c0_i32_0 : i32, i32
  }
  func.func @transform_4(%arg0: i32) -> (i32, i32) {
    %c0_i32 = arith.constant 0 : i32
    %c0_i32_0 = arith.constant 0 : i32
    %c0_i32_1 = arith.constant 0 : i32
    return %c0_i32, %c0_i32_0 : i32, i32
  }
  func.func @transform_5(%arg0: i32) -> (i32, i32) {
    %c0_i32 = arith.constant 0 : i32
    %c0_i32_0 = arith.constant 0 : i32
    %c0_i32_1 = arith.constant 0 : i32
    return %c0_i32, %c0_i32_0 : i32, i32
  }
  func.func @transform_6(%arg0: i32) -> (i32, i32) {
    %c0_i32 = arith.constant 0 : i32
    %c0_i32_0 = arith.constant 0 : i32
    %c0_i32_1 = arith.constant 0 : i32
    return %c0_i32, %c0_i32_0 : i32, i32
  }
  func.func @transform_7(%arg0: i32) -> (i32, i32) {
    %c0_i32 = arith.constant 0 : i32
    %c0_i32_0 = arith.constant 0 : i32
    %c0_i32_1 = arith.constant 0 : i32
    return %c0_i32, %c0_i32_0 : i32, i32
  }
  func.func @transform_8(%arg0: i32) -> (i32, i32) {
    %c0_i32 = arith.constant 0 : i32
    %c0_i32_0 = arith.constant 0 : i32
    %c0_i32_1 = arith.constant 0 : i32
    return %c0_i32, %c0_i32_0 : i32, i32
  }
  func.func @transform_9(%arg0: i32) -> (i32, i32) {
    %c0_i32 = arith.constant 0 : i32
    %c0_i32_0 = arith.constant 0 : i32
    %c0_i32_1 = arith.constant 0 : i32
    return %c0_i32, %c0_i32_0 : i32, i32
  }
  func.func @transform_10(%arg0: i32) -> (i32, i32) {
    %c0_i32 = arith.constant 0 : i32
    %c0_i32_0 = arith.constant 0 : i32
    %c0_i32_1 = arith.constant 0 : i32
    return %c0_i32, %c0_i32_0 : i32, i32
  }
  func.func @transform_11(%arg0: i32) -> (i32, i32, i32) {
    %c0_i32 = arith.constant 0 : i32
    %c0_i32_0 = arith.constant 0 : i32
    %c0_i32_1 = arith.constant 0 : i32
    %c0_i32_2 = arith.constant 0 : i32
    return %c0_i32, %c0_i32_0, %c0_i32_1 : i32, i32, i32
  }
  func.func @transform_12(%arg0: i32) -> (i32, i32) {
    %c0_i32 = arith.constant 0 : i32
    %c0_i32_0 = arith.constant 0 : i32
    %c0_i32_1 = arith.constant 0 : i32
    return %c0_i32, %c0_i32_0 : i32, i32
  }
  func.func @transform_13(%arg0: i32) -> (i32, i32) {
    %c0_i32 = arith.constant 0 : i32
    %c0_i32_0 = arith.constant 0 : i32
    %c0_i32_1 = arith.constant 0 : i32
    return %c0_i32, %c0_i32_0 : i32, i32
  }
  func.func @transform_14(%arg0: i32) -> (i32, i32) {
    %c0_i32 = arith.constant 0 : i32
    %c0_i32_0 = arith.constant 0 : i32
    %c0_i32_1 = arith.constant 0 : i32
    return %c0_i32, %c0_i32_0 : i32, i32
  }
  func.func @transform_15(%arg0: i32) -> (i32, i32) {
    %c0_i32 = arith.constant 0 : i32
    %c0_i32_0 = arith.constant 0 : i32
    %c0_i32_1 = arith.constant 0 : i32
    return %c0_i32, %c0_i32_0 : i32, i32
  }
  func.func @transform_16(%arg0: i32) -> (i32, i32) {
    %c0_i32 = arith.constant 0 : i32
    %c0_i32_0 = arith.constant 0 : i32
    %c0_i32_1 = arith.constant 0 : i32
    return %c0_i32, %c0_i32_0 : i32, i32
  }
  func.func @transform_17(%arg0: i32) -> (i32, i32) {
    %c0_i32 = arith.constant 0 : i32
    %c0_i32_0 = arith.constant 0 : i32
    %c0_i32_1 = arith.constant 0 : i32
    return %c0_i32, %c0_i32_0 : i32, i32
  }
  func.func @transform_18(%arg0: i32) -> (i32, i32, i32) {
    %c0_i32 = arith.constant 0 : i32
    %c0_i32_0 = arith.constant 0 : i32
    %c0_i32_1 = arith.constant 0 : i32
    return %arg0, %c0_i32, %c0_i32_0 : i32, i32, i32
  }
}

</mosaic_0001>

<llo_original>
// kernel: gpt_forward.5
$region0: #{gpt_forward.5}
  #allocation0 [shape = 'u32[]', space=smem, size = 0x4, offset = 0x4, fixed_abs, tag = 'smem constant byte address 0x4 - core index']
  #allocation1 [shape = 'u32[144,128]{1,0:T(1,128)}', space=vmem, size = 0x12000, scoped, tag = 'internal scratch']
  %s0 = inlined_call_operand.vmem [shape: f32[2,8,64], index: 0, kind: input, shape index: {}]
  %s1 = inlined_call_operand.vmem [shape: f32[1,64], index: 1, kind: input, shape index: {}]
  %s2 = inlined_call_operand.vmem [shape: f32[1,64], index: 2, kind: input, shape index: {}]
  %s3 = inlined_call_operand.vmem [shape: bf16[64,128], index: 3, kind: input, shape index: {}]
  %s4 = inlined_call_operand.hbm [shape: bf16[2,8,128], index: 4, kind: output, shape index: {}]
  %s5 = sld [smem:[#allocation0]]
  $region49: #{gpt_forward.5} parent=0
    _
  %s7 = ssub.s32 1, %s5
  %s8 = scalar_select 0, %s7, %s5
  $region1: #{gpt_forward.5} parent=0
    #allocation2 [shape = 'u8[4096]{0}', space=vmem, size = 0x1000, scoped, tag = 'output window, operand 0']
    #allocation3 [shape = 's32[2]{0}', space=sflag, size = 0x8, scoped, tag = 'scoped memory for gpt_forward.5']
    %9 = vsyncpa [#allocation3], 0
    %s10 = scalar_lea.sflag [#allocation3], 1
    %11 = vsyncpa %s10, 0
    loop: start=0, step=1, limit=4
    $region2: #{gpt_forward.5} parent=1 // loop_pre_header
      _
    $region3: #{gpt_forward.5} parent=1 // loop_header
      %s13 = sphi 0, %s17
      %p14 = scmp.ge.s32.totalorder %s13, 4
      %s20 = sphi 0, %s32
      %s21 = sphi 0, %s28
      %s22 = sphi 0, %s20
      %s23 = sphi 0, %s21
      %s24 = sphi 0, %s22
      %s25 = sphi 0, %s23
      %s35 = sphi 0, %s37
      %s38 = sphi 0, %s35
      %s39 = sphi 0, %s38
      %s55 = sphi 0, %s39
      %s59 = sphi 0, %s59
      %s61 = sphi 0, %s59
      %s62 = sphi 0, %s61
      %s76 = sphi 0, %s62
      %s80 = sphi 0, %s80
      %s82 = sphi 0, %s80
      %s83 = sphi 0, %s82
      %s97 = sphi 0, %s83
      %s103 = sphi 0, %s105
      %s106 = sphi 0, %s103
      %s107 = sphi 0, %s106
      %s123 = sphi 0, %s107
      %s131 = sphi 0, %s133
      %s134 = sphi 0, %s131
      %s135 = sphi 0, %s134
      %s151 = sphi 0, %s135
    $region4: #{gpt_forward.5} parent=1 // loop_header_branch
      %16 = sbr.rel (%p14) target = $region8
    $region5: #{gpt_forward.5} parent=1 // loop_body
      %s18 = ssub.s32 %s13, 1
      %s19 = ssub.s32 %s13, 2
      %s26 = sadd.s32 1, %s21
      %p27 = scmp.ge.s32.totalorder %s26, 1
      %s28 = scalar_select %p27, 0, %s26
      %s29 = sadd.s32 1, %s20
      %s30 = scalar_select %p27, %s29, %s20
      %p31 = scmp.ge.s32.totalorder %s30, 2
      %s32 = scalar_select %p31, 0, %s30
      %s33 = ssub.s32 %s20, %s32
      %p34 = scmp.eq.s32.totalorder %s33, 0
      %s36 = sadd.s32 %s35, 1
      %s37 = scalar_select %p34, %s35, %s36
      %p40 = pneg %p34
      %p41 = scmp.eq.s32.totalorder %s13, 1
      %p42 = por %p40, %p41
      %p43 = scmp.ne.s32.totalorder %s35, %s38
      %p44 = scmp.eq.s32.totalorder %s13, 0
      %p45 = por %p43, %p44
      %p46 = scmp.ne.s32.totalorder %s35, %s38
      %p47 = scmp.eq.s32.totalorder %s18, 1
      %p48 = por %p46, %p47
      %p49 = scmp.ne.s32.totalorder %s38, %s39
      %p50 = scmp.eq.s32.totalorder %s18, 0
      %p51 = por %p49, %p50
      %p52 = scmp.ne.s32.totalorder %s38, %s39
      %p53 = scmp.eq.s32.totalorder %s19, 1
      %p54 = por %p52, %p53
      %p56 = scmp.ne.s32.totalorder %s39, %s55
      %p57 = scmp.eq.s32.totalorder %s19, 0
      %p58 = por %p56, %p57
      %s60 = sadd.s32 %s59, 1
      %p63 = scmp.eq.s32.totalorder %s13, 1
      %p64 = scmp.ne.s32.totalorder %s59, %s61
      %p65 = scmp.eq.s32.totalorder %s13, 0
      %p66 = por %p64, %p65
      %p67 = scmp.ne.s32.totalorder %s59, %s61
      %p68 = scmp.eq.s32.totalorder %s18, 1
      %p69 = por %p67, %p68
      %p70 = scmp.ne.s32.totalorder %s61, %s62
      %p71 = scmp.eq.s32.totalorder %s18, 0
      %p72 = por %p70, %p71
      %p73 = scmp.ne.s32.totalorder %s61, %s62
      %p74 = scmp.eq.s32.totalorder %s19, 1
      %p75 = por %p73, %p74
      %p77 = scmp.ne.s32.totalorder %s62, %s76
      %p78 = scmp.eq.s32.totalorder %s19, 0
      %p79 = por %p77, %p78
      %s81 = sadd.s32 %s80, 1
      %p84 = scmp.eq.s32.totalorder %s13, 1
      %p85 = scmp.ne.s32.totalorder %s80, %s82
      %p86 = scmp.eq.s32.totalorder %s13, 0
      %p87 = por %p85, %p86
      %p88 = scmp.ne.s32.totalorder %s80, %s82
      %p89 = scmp.eq.s32.totalorder %s18, 1
      %p90 = por %p88, %p89
      %p91 = scmp.ne.s32.totalorder %s82, %s83
      %p92 = scmp.eq.s32.totalorder %s18, 0
      %p93 = por %p91, %p92
      %p94 = scmp.ne.s32.totalorder %s82, %s83
      %p95 = scmp.eq.s32.totalorder %s19, 1
      %p96 = por %p94, %p95
      %p98 = scmp.ne.s32.totalorder %s83, %s97
      %p99 = scmp.eq.s32.totalorder %s19, 0
      %p100 = por %p98, %p99
      %s101 = ssub.s32 %s21, %s28
      %p102 = scmp.eq.s32.totalorder %s101, 0
      %s104 = sadd.s32 %s103, 1
      %s105 = scalar_select %p102, %s103, %s104
      %p108 = pneg %p102
      %p109 = scmp.eq.s32.totalorder %s13, 1
      %p110 = por %p108, %p109
      %p111 = scmp.ne.s32.totalorder %s103, %s106
      %p112 = scmp.eq.s32.totalorder %s13, 0
      %p113 = por %p111, %p112
      %p114 = scmp.ne.s32.totalorder %s103, %s106
      %p115 = scmp.eq.s32.totalorder %s18, 1
      %p116 = por %p114, %p115
      %p117 = scmp.ne.s32.totalorder %s106, %s107
      %p118 = scmp.eq.s32.totalorder %s18, 0
      %p119 = por %p117, %p118
      %p120 = scmp.ne.s32.totalorder %s106, %s107
      %p121 = scmp.eq.s32.totalorder %s19, 1
      %p122 = por %p120, %p121
      %p124 = scmp.ne.s32.totalorder %s107, %s123
      %p125 = scmp.eq.s32.totalorder %s19, 0
      %p126 = por %p124, %p125
      %s127 = ssub.s32 %s20, %s32
      %s128 = ssub.s32 %s21, %s28
      %s129 = sor.u32 %s127, %s128
      %p130 = scmp.eq.s32.totalorder %s129, 0
      %s132 = sadd.s32 %s131, 1
      %s133 = scalar_select %p130, %s131, %s132
      %p136 = pneg %p130
      %p137 = scmp.eq.s32.totalorder %s13, 1
      %p138 = por %p136, %p137
      %p139 = scmp.ne.s32.totalorder %s131, %s134
      %p140 = scmp.eq.s32.totalorder %s13, 0
      %p141 = por %p139, %p140
      %p142 = scmp.ne.s32.totalorder %s131, %s134
      %p143 = scmp.eq.s32.totalorder %s18, 1
      %p144 = por %p142, %p143
      %p145 = scmp.ne.s32.totalorder %s134, %s135
      %p146 = scmp.eq.s32.totalorder %s18, 0
      %p147 = por %p145, %p146
      %p148 = scmp.ne.s32.totalorder %s134, %s135
      %p149 = scmp.eq.s32.totalorder %s19, 1
      %p150 = por %p148, %p149
      %p152 = scmp.ne.s32.totalorder %s135, %s151
      %p153 = scmp.eq.s32.totalorder %s19, 0
      %p154 = por %p152, %p153
      %p155 = scmp.le.s32.totalorder 1, %s13
      %p156 = scmp.lt.s32.totalorder %s13, 3
      %p157 = pnand %p155, %p156
      %p158 = pneg %p157
      // Predicated region
      $region9: #{gpt_forward.5} parent=5 // pred_check
        _
      $region10: #{gpt_forward.5} parent=5 // pred_check_branch
        %160 = sbr.rel (%p157) target = $region12
      $region11: #{gpt_forward.5} parent=5 // pred_region
        %s161 = ssub.s32 %s13, 1
        // Predicated region
        $region13: #{gpt_forward.5} parent=11 // pred_check
          %p162 = pneg %p72
        $region14: #{gpt_forward.5} parent=11 // pred_check_branch
          %164 = sbr.rel (%p162) target = $region16
        $region15: #{gpt_forward.5} parent=11 // pred_region
          _
        $region16: #{gpt_forward.5} parent=11 // pred_fallthru
          _
        // Predicated region
        $region17: #{gpt_forward.5} parent=11 // pred_check
          %p165 = pneg %p93
        $region18: #{gpt_forward.5} parent=11 // pred_check_branch
          %167 = sbr.rel (%p165) target = $region20
        $region19: #{gpt_forward.5} parent=11 // pred_region
          _
        $region20: #{gpt_forward.5} parent=11 // pred_fallthru
          _
        // Predicated region
        $region21: #{gpt_forward.5} parent=11 // pred_check
          %p168 = pneg %p119
        $region22: #{gpt_forward.5} parent=11 // pred_check_branch
          %170 = sbr.rel (%p168) target = $region24
        $region23: #{gpt_forward.5} parent=11 // pred_region
          %p171 = scmp.lt.s32.totalorder %s23, 0
          %s172 = scalar_select %p171, %s23, 0
          %s173 = smul.addr %s172, 4
          %s174 = scalar_lea.vmem %s3, %s173
        $region24: #{gpt_forward.5} parent=11 // pred_fallthru
          _
      $region12: #{gpt_forward.5} parent=5 // pred_fallthru
        _
      %p175 = scmp.lt.s32.totalorder %s13, 2
      // Predicated region
      $region25: #{gpt_forward.5} parent=5 // pred_check
        %p176 = pneg %p175
      $region26: #{gpt_forward.5} parent=5 // pred_check_branch
        %178 = sbr.rel (%p176) target = $region28
      $region27: #{gpt_forward.5} parent=5 // pred_region
        // Predicated region
        $region29: #{gpt_forward.5} parent=27 // pred_check
          %p179 = pneg %p45
        $region30: #{gpt_forward.5} parent=27 // pred_check_branch
          %181 = sbr.rel (%p179) target = $region32
        $region31: #{gpt_forward.5} parent=27 // pred_region
          %p182 = scmp.lt.s32.totalorder %s20, 1
          %s183 = scalar_select %p182, %s20, 1
          %s184 = smul.addr %s183, 8
          %s185 = scalar_lea.vmem %s0, %s184
        $region32: #{gpt_forward.5} parent=27 // pred_fallthru
          _
      $region28: #{gpt_forward.5} parent=5 // pred_fallthru
        _
      %p186 = scmp.le.s32.totalorder 1, %s13
      %p187 = scmp.lt.s32.totalorder %s13, 3
      %p188 = pnand %p186, %p187
      %p189 = pneg %p188
      // Predicated region
      $region33: #{gpt_forward.5} parent=5 // pred_check
        _
      $region34: #{gpt_forward.5} parent=5 // pred_check_branch
        %191 = sbr.rel (%p188) target = $region36
      $region35: #{gpt_forward.5} parent=5 // pred_region
        %s192 = ssub.s32 %s13, 1
        %p193 = scmp.lt.s32.totalorder %s22, 1
        %s194 = scalar_select %p193, %s22, 1
        %s195 = smul.addr %s194, 8
        %s196 = scalar_lea.vmem %s0, %s195
        %p197 = pneg %p51
        %p198 = pneg %p48
        %p199 = pneg %p72
        %p200 = pneg %p69
        %p201 = pneg %p93
        %p202 = pneg %p90
        %p203 = scmp.lt.s32.totalorder %s23, 0
        %s204 = scalar_select %p203, %s23, 0
        %s205 = smul.addr %s204, 4
        %s206 = scalar_lea.vmem %s3, %s205
        %p207 = pneg %p119
        %p208 = pneg %p116
        %p209 = pneg %p147
        %p210 = pneg %p144
        %s211 = sand.u32 %s134, 1
        %s212 = scalar_lea.sflag [#allocation3], %s211
        %s213 = sand.u32 %s134, 1
        %s214 = smul.addr %s213, 4
        %s215 = scalar_lea.vmem [#allocation2], %s214
        %p216 = scmp.lt.s32.totalorder %s22, 1
        %s217 = scalar_select %p216, %s22, 1
        %s218 = smul.addr %s217, 8
        %s219 = scalar_lea.vmem %s0, %s218
        %p220 = scmp.lt.s32.totalorder %s23, 0
        %s221 = scalar_select %p220, %s23, 0
        %s222 = smul.addr %s221, 4
        %s223 = scalar_lea.vmem %s3, %s222
        %v225 = vld [vmem:[%s219] sm:$0xff]
        %v226 = vld [vmem:[%s1] sm:$0x1]
        %v227 = vld [vmem:[%s2] sm:$0x1]
        %vm228 = vcmask 523264
        %v229 = vsel %vm228, %v225, 0.0
        %230 = vadd.xlane.f32.xlu0 %v229
        %v231 = vpop.xlane.xlu0 %230
        %v232 = vrcp.pop 64.0
        %v233 = vmul.f32 %v231, %v232
        %v234 = vsub.f32 %v225, %v233
        %v235 = vmul.f32 %v234, %v234
        %v236 = vsel %vm228, %v235, 0.0
        %237 = vadd.xlane.f32.xlu0 %v236
        %v238 = vpop.xlane.xlu0 %237
        %v239 = vmul.f32 %v238, %v232
        %v240 = vadd.f32 %v239, 1e-05
        %v241 = vrsqrt.pop %v240
        %v242 = vmul.f32 %v234, %v241
        %v244 = vlaneseq
        %v245 = vshrl.u32 %v244, 7
        %v246 = vsub.s32 0, %v245
        %v247 = vrot.slane %v226, %v246
        %v249 = vmul.f32 %v242, %v247
        %v251 = vlaneseq
        %v252 = vshrl.u32 %v251, 7
        %v253 = vsub.s32 0, %v252
        %v254 = vrot.slane %v227, %v253
        %v256 = vadd.f32 %v249, %v254
        %v257 = vpack.c.bf16 %v256, %v256
        %v258 = vld [vmem:[%s223] sm:$0xf]
        %v259 = vld [vmem:[%s223 + $0x4] sm:$0xf]
        %v260 = vld [vmem:[%s223 + $0x8] sm:$0xf]
        %v261 = vld [vmem:[%s223 + $0xc] sm:$0xf]
        %v262 = vld [vmem:[%s223 + $0x10] sm:$0xf]
        %v263 = vld [vmem:[%s223 + $0x14] sm:$0xf]
        %v264 = vld [vmem:[%s223 + $0x18] sm:$0xf]
        %v265 = vld [vmem:[%s223 + $0x1c] sm:$0xf]
        %v274 = vunpack.c.l.b16 %v258
        %v275 = vunpack.c.l.b16 %v259
        %v276 = vunpack.c.l.b16 %v260
        %v277 = vunpack.c.l.b16 %v261
        %v278 = vunpack.c.l.b16 %v262
        %v279 = vunpack.c.l.b16 %v263
        %v280 = vunpack.c.l.b16 %v264
        %v281 = vunpack.c.l.b16 %v265
        %v282 = vpack.c.b16 %v275, %v274
        %v283 = vpack.c.b16 %v277, %v276
        %v284 = vpack.c.b16 %v279, %v278
        %v285 = vpack.c.b16 %v281, %v280
        %v291 = vsel %vm228, %v257, 0
        %293 = vmatprep.subr.bf16.mxu0 0
        %294 = vmatpush1.bf16.msra.mxu0 %v282
        %295 = vmatprep.subr.bf16.mxu0 0
        %296 = vmatpush1.bf16.msra.mxu0 %v283
        %297 = vmatprep.subr.bf16.mxu0 0
        %298 = vmatpush1.bf16.msra.mxu0 %v284
        %299 = vmatprep.subr.bf16.mxu0 0
        %300 = vmatpush1.bf16.msra.mxu0 %v285
        %301 = vmatprep.subr.bf16.mxu0 0
        %302 = vmatpush1.bf16.msra.mxu0 0
        %303 = vmatprep.subr.bf16.mxu0 0
        %304 = vmatpush1.bf16.msra.mxu0 0
        %305 = vmatprep.subr.bf16.mxu0 0
        %306 = vmatpush1.bf16.msra.mxu0 0
        %307 = vmatprep.subr.bf16.mxu0 0
        %308 = vmatpush1.bf16.msra.mxu0 0
        %309 = vmatprep.subr.bf16.mxu0 0
        %310 = vmatpush1.bf16.msra.mxu0 0
        %311 = vmatprep.subr.bf16.mxu0 0
        %312 = vmatpush1.bf16.msra.mxu0 0
        %313 = vmatprep.subr.bf16.mxu0 0
        %314 = vmatpush1.bf16.msra.mxu0 0
        %315 = vmatprep.subr.bf16.mxu0 0
        %316 = vmatpush1.bf16.msra.mxu0 0
        %317 = vmatprep.subr.bf16.mxu0 0
        %318 = vmatpush1.bf16.msra.mxu0 0
        %319 = vmatprep.subr.bf16.mxu0 0
        %320 = vmatpush1.bf16.msra.mxu0 0
        %321 = vmatprep.subr.bf16.mxu0 0
        %322 = vmatpush1.bf16.msra.mxu0 0
        %323 = vmatprep.subr.bf16.mxu0 0
        %324 = vmatpush1.bf16.msra.mxu0 0
        %325 = vmatprep.mubr.bf16.mxu0 0
        %326 = vmatmul.mubr.bf16.gmra.mrb[0].mxu0 %v291
        %v327 = vpop.f32.mrb[0].mxu0
        %v328 = vadd.f32 0.0, %v327
        %v329 = vpop.f32.mrb[0].mxu0
        %v330 = vpop.f32.mrb[0].mxu0
        %v331 = vpop.f32.mrb[0].mxu0
        %332 = vdwg.mxu0
        %v333 = vpack.c.bf16 %v328, %v328
        %334 = vst [vmem:[%s215] sm:$0xf] %v333
        %s335 = sand.u32 %s134, 1
        %s336 = scalar_lea.sflag [#allocation3], %s335
        %s337 = sand.u32 %s134, 1
        %s338 = smul.addr %s337, 4
        %s339 = scalar_lea.vmem [#allocation2], %s338
        // Predicated region
        $region37: #{gpt_forward.5} parent=35 // pred_check
          %p340 = pneg %p144
        $region38: #{gpt_forward.5} parent=35 // pred_check_branch
          %342 = sbr.rel (%p340) target = $region40
        $region39: #{gpt_forward.5} parent=35 // pred_region
          %s344 = ssub.s32 64, 64
          %345 = vsyncadd %s336, %s344
          %s346 = sadd.s32 %s23, %s22
          %s347 = smul.addr %s346, 64
          %s348 = scalar_lea.hbm %s4, %s347
          %s350 = sshll.u32 %s339, 4
          %s351 = int_to_ptr.vmem [resolvable:$true] %s350
          %353 = dma.vmem_to_hbm [thread:$0]  %s351, 64, %s348, %s336
        $region40: #{gpt_forward.5} parent=35 // pred_fallthru
          _
      $region36: #{gpt_forward.5} parent=5 // pred_fallthru
        _
      %p354 = scmp.le.s32.totalorder 2, %s13
      // Predicated region
      $region41: #{gpt_forward.5} parent=5 // pred_check
        %p355 = pneg %p354
      $region42: #{gpt_forward.5} parent=5 // pred_check_branch
        %357 = sbr.rel (%p355) target = $region44
      $region43: #{gpt_forward.5} parent=5 // pred_region
        %s358 = ssub.s32 %s13, 2
        // Predicated region
        $region45: #{gpt_forward.5} parent=43 // pred_check
          %p359 = pneg %p150
        $region46: #{gpt_forward.5} parent=43 // pred_check_branch
          %361 = sbr.rel (%p359) target = $region48
        $region47: #{gpt_forward.5} parent=43 // pred_region
          %s362 = sand.u32 %s135, 1
          %s363 = scalar_lea.sflag [#allocation3], %s362
          %s364 = sand.u32 %s135, 1
          %s365 = smul.addr %s364, 4
          %s366 = scalar_lea.vmem [#allocation2], %s365
          %367 = dma.done %s363, 64
        $region48: #{gpt_forward.5} parent=43 // pred_fallthru
          _
      $region44: #{gpt_forward.5} parent=5 // pred_fallthru
        _
    $region6: #{gpt_forward.5} parent=1 // loop_footer
      %s17 = sadd.s32 1, %s13
    $region7: #{gpt_forward.5} parent=1 // loop_footer_branch
      %12 = sbr.rel target = $region3
    $region8: #{gpt_forward.5} parent=1 // loop_exit
      _
    %368 = vsyncpa [#allocation3], 1
    %s369 = scalar_lea.sflag [#allocation3], 1
    %370 = vsyncpa %s369, 1

// kernel: gpt_forward.3
$region0: #{gpt_forward.3}
  #allocation0 [shape = 'u32[]', space=smem, size = 0x4, offset = 0x4, fixed_abs, tag = 'smem constant byte address 0x4 - core index']
  #allocation1 [shape = 'u32[144,128]{1,0:T(1,128)}', space=vmem, size = 0x12000, scoped, tag = 'internal scratch']
  %s0 = inlined_call_operand.vmem [shape: f32[2,8,64], index: 0, kind: input, shape index: {}, may-alias: {0,18}]
  %s1 = inlined_call_operand.vmem [shape: f32[8,8], index: 1, kind: input, shape index: {}]
  %s2 = inlined_call_operand.vmem [shape: f32[8,1], index: 2, kind: input, shape index: {}]
  %s3 = inlined_call_operand.vmem [shape: f32[1,64], index: 3, kind: input, shape index: {}]
  %s4 = inlined_call_operand.vmem [shape: f32[1,64], index: 4, kind: input, shape index: {}]
  %s5 = inlined_call_operand.vmem [shape: f32[1,64], index: 5, kind: input, shape index: {}]
  %s6 = inlined_call_operand.vmem [shape: f32[1,64], index: 6, kind: input, shape index: {}]
  %s7 = inlined_call_operand.vmem [shape: bf16[64,192], index: 7, kind: input, shape index: {}]
  %s8 = inlined_call_operand.vmem [shape: f32[1,192], index: 8, kind: input, shape index: {}]
  %s9 = inlined_call_operand.vmem [shape: bf16[64,64], index: 9, kind: input, shape index: {}]
  %s10 = inlined_call_operand.vmem [shape: f32[1,64], index: 10, kind: input, shape index: {}]
  %s11 = inlined_call_operand.vmem [shape: bf16[4,8,8], index: 11, kind: input, shape index: {}]
  %s12 = inlined_call_operand.vmem [shape: f32[1,64], index: 12, kind: input, shape index: {}]
  %s13 = inlined_call_operand.vmem [shape: f32[1,64], index: 13, kind: input, shape index: {}]
  %s14 = inlined_call_operand.vmem [shape: bf16[64,256], index: 14, kind: input, shape index: {}]
  %s15 = inlined_call_operand.vmem [shape: f32[1,256], index: 15, kind: input, shape index: {}]
  %s16 = inlined_call_operand.vmem [shape: bf16[256,64], index: 16, kind: input, shape index: {}]
  %s17 = inlined_call_operand.vmem [shape: f32[1,64], index: 17, kind: input, shape index: {}]
  %s18 = inlined_call_operand.vmem [shape: f32[2,8,64], index: 18, kind: output, shape index: {}, may-alias: {0,18}]
  %s19 = sld [smem:[#allocation0]]
  $region105: #{gpt_forward.3} parent=0
    _
  %s21 = ssub.s32 1, %s19
  %s22 = scalar_select 0, %s21, %s19
  loop: start=0, step=1, limit=4
  $region2: #{gpt_forward.3} parent=0 // loop_pre_header
    _
  $region3: #{gpt_forward.3} parent=0 // loop_header
    %s24 = sphi 0, %s28
    %p25 = scmp.ge.s32.totalorder %s24, 4
    %s34 = sphi 0, %s36
    %s37 = sphi 0, %s34
    %s38 = sphi 0, %s37
    %s54 = sphi 0, %s38
    %s58 = sphi 0, %s58
    %s60 = sphi 0, %s58
    %s61 = sphi 0, %s60
    %s75 = sphi 0, %s61
    %s79 = sphi 0, %s79
    %s81 = sphi 0, %s79
    %s82 = sphi 0, %s81
    %s96 = sphi 0, %s82
    %s100 = sphi 0, %s100
    %s102 = sphi 0, %s100
    %s103 = sphi 0, %s102
    %s117 = sphi 0, %s103
    %s121 = sphi 0, %s121
    %s123 = sphi 0, %s121
    %s124 = sphi 0, %s123
    %s138 = sphi 0, %s124
    %s142 = sphi 0, %s142
    %s144 = sphi 0, %s142
    %s145 = sphi 0, %s144
    %s159 = sphi 0, %s145
    %s163 = sphi 0, %s163
    %s165 = sphi 0, %s163
    %s166 = sphi 0, %s165
    %s180 = sphi 0, %s166
    %s184 = sphi 0, %s184
    %s186 = sphi 0, %s184
    %s187 = sphi 0, %s186
    %s201 = sphi 0, %s187
    %s205 = sphi 0, %s205
    %s207 = sphi 0, %s205
    %s208 = sphi 0, %s207
    %s222 = sphi 0, %s208
    %s226 = sphi 0, %s226
    %s228 = sphi 0, %s226
    %s229 = sphi 0, %s228
    %s243 = sphi 0, %s229
    %s247 = sphi 0, %s247
    %s249 = sphi 0, %s247
    %s250 = sphi 0, %s249
    %s264 = sphi 0, %s250
    %s268 = sphi 0, %s268
    %s270 = sphi 0, %s268
    %s271 = sphi 0, %s270
    %s285 = sphi 0, %s271
    %s289 = sphi 0, %s289
    %s291 = sphi 0, %s289
    %s292 = sphi 0, %s291
    %s306 = sphi 0, %s292
    %s310 = sphi 0, %s310
    %s312 = sphi 0, %s310
    %s313 = sphi 0, %s312
    %s327 = sphi 0, %s313
    %s331 = sphi 0, %s331
    %s333 = sphi 0, %s331
    %s334 = sphi 0, %s333
    %s348 = sphi 0, %s334
    %s352 = sphi 0, %s352
    %s354 = sphi 0, %s352
    %s355 = sphi 0, %s354
    %s369 = sphi 0, %s355
    %s373 = sphi 0, %s373
    %s375 = sphi 0, %s373
    %s376 = sphi 0, %s375
    %s390 = sphi 0, %s376
    %s394 = sphi 0, %s394
    %s396 = sphi 0, %s394
    %s397 = sphi 0, %s396
    %s411 = sphi 0, %s397
    %s417 = sphi 0, %s419
    %s420 = sphi 0, %s417
    %s421 = sphi 0, %s420
    %s437 = sphi 0, %s421
  $region4: #{gpt_forward.3} parent=0 // loop_header_branch
    %27 = sbr.rel (%p25) target = $region8
  $region5: #{gpt_forward.3} parent=0 // loop_body
    %s29 = ssub.s32 %s24, 1
    %s30 = ssub.s32 %s24, 2
    %s31 = sadd.s32 %s24, 1
    %s32 = ssub.s32 %s24, %s31
    %p33 = scmp.eq.s32.totalorder %s32, 0
    %s35 = sadd.s32 %s34, 1
    %s36 = scalar_select %p33, %s34, %s35
    %p39 = pneg %p33
    %p40 = scmp.eq.s32.totalorder %s24, 1
    %p41 = por %p39, %p40
    %p42 = scmp.ne.s32.totalorder %s34, %s37
    %p43 = scmp.eq.s32.totalorder %s24, 0
    %p44 = por %p42, %p43
    %p45 = scmp.ne.s32.totalorder %s34, %s37
    %p46 = scmp.eq.s32.totalorder %s29, 1
    %p47 = por %p45, %p46
    %p48 = scmp.ne.s32.totalorder %s37, %s38
    %p49 = scmp.eq.s32.totalorder %s29, 0
    %p50 = por %p48, %p49
    %p51 = scmp.ne.s32.totalorder %s37, %s38
    %p52 = scmp.eq.s32.totalorder %s30, 1
    %p53 = por %p51, %p52
    %p55 = scmp.ne.s32.totalorder %s38, %s54
    %p56 = scmp.eq.s32.totalorder %s30, 0
    %p57 = por %p55, %p56
    %s59 = sadd.s32 %s58, 1
    %p62 = scmp.eq.s32.totalorder %s24, 1
    %p63 = scmp.ne.s32.totalorder %s58, %s60
    %p64 = scmp.eq.s32.totalorder %s24, 0
    %p65 = por %p63, %p64
    %p66 = scmp.ne.s32.totalorder %s58, %s60
    %p67 = scmp.eq.s32.totalorder %s29, 1
    %p68 = por %p66, %p67
    %p69 = scmp.ne.s32.totalorder %s60, %s61
    %p70 = scmp.eq.s32.totalorder %s29, 0
    %p71 = por %p69, %p70
    %p72 = scmp.ne.s32.totalorder %s60, %s61
    %p73 = scmp.eq.s32.totalorder %s30, 1
    %p74 = por %p72, %p73
    %p76 = scmp.ne.s32.totalorder %s61, %s75
    %p77 = scmp.eq.s32.totalorder %s30, 0
    %p78 = por %p76, %p77
    %s80 = sadd.s32 %s79, 1
    %p83 = scmp.eq.s32.totalorder %s24, 1
    %p84 = scmp.ne.s32.totalorder %s79, %s81
    %p85 = scmp.eq.s32.totalorder %s24, 0
    %p86 = por %p84, %p85
    %p87 = scmp.ne.s32.totalorder %s79, %s81
    %p88 = scmp.eq.s32.totalorder %s29, 1
    %p89 = por %p87, %p88
    %p90 = scmp.ne.s32.totalorder %s81, %s82
    %p91 = scmp.eq.s32.totalorder %s29, 0
    %p92 = por %p90, %p91
    %p93 = scmp.ne.s32.totalorder %s81, %s82
    %p94 = scmp.eq.s32.totalorder %s30, 1
    %p95 = por %p93, %p94
    %p97 = scmp.ne.s32.totalorder %s82, %s96
    %p98 = scmp.eq.s32.totalorder %s30, 0
    %p99 = por %p97, %p98
    %s101 = sadd.s32 %s100, 1
    %p104 = scmp.eq.s32.totalorder %s24, 1
    %p105 = scmp.ne.s32.totalorder %s100, %s102
    %p106 = scmp.eq.s32.totalorder %s24, 0
    %p107 = por %p105, %p106
    %p108 = scmp.ne.s32.totalorder %s100, %s102
    %p109 = scmp.eq.s32.totalorder %s29, 1
    %p110 = por %p108, %p109
    %p111 = scmp.ne.s32.totalorder %s102, %s103
    %p112 = scmp.eq.s32.totalorder %s29, 0
    %p113 = por %p111, %p112
    %p114 = scmp.ne.s32.totalorder %s102, %s103
    %p115 = scmp.eq.s32.totalorder %s30, 1
    %p116 = por %p114, %p115
    %p118 = scmp.ne.s32.totalorder %s103, %s117
    %p119 = scmp.eq.s32.totalorder %s30, 0
    %p120 = por %p118, %p119
    %s122 = sadd.s32 %s121, 1
    %p125 = scmp.eq.s32.totalorder %s24, 1
    %p126 = scmp.ne.s32.totalorder %s121, %s123
    %p127 = scmp.eq.s32.totalorder %s24, 0
    %p128 = por %p126, %p127
    %p129 = scmp.ne.s32.totalorder %s121, %s123
    %p130 = scmp.eq.s32.totalorder %s29, 1
    %p131 = por %p129, %p130
    %p132 = scmp.ne.s32.totalorder %s123, %s124
    %p133 = scmp.eq.s32.totalorder %s29, 0
    %p134 = por %p132, %p133
    %p135 = scmp.ne.s32.totalorder %s123, %s124
    %p136 = scmp.eq.s32.totalorder %s30, 1
    %p137 = por %p135, %p136
    %p139 = scmp.ne.s32.totalorder %s124, %s138
    %p140 = scmp.eq.s32.totalorder %s30, 0
    %p141 = por %p139, %p140
    %s143 = sadd.s32 %s142, 1
    %p146 = scmp.eq.s32.totalorder %s24, 1
    %p147 = scmp.ne.s32.totalorder %s142, %s144
    %p148 = scmp.eq.s32.totalorder %s24, 0
    %p149 = por %p147, %p148
    %p150 = scmp.ne.s32.totalorder %s142, %s144
    %p151 = scmp.eq.s32.totalorder %s29, 1
    %p152 = por %p150, %p151
    %p153 = scmp.ne.s32.totalorder %s144, %s145
    %p154 = scmp.eq.s32.totalorder %s29, 0
    %p155 = por %p153, %p154
    %p156 = scmp.ne.s32.totalorder %s144, %s145
    %p157 = scmp.eq.s32.totalorder %s30, 1
    %p158 = por %p156, %p157
    %p160 = scmp.ne.s32.totalorder %s145, %s159
    %p161 = scmp.eq.s32.totalorder %s30, 0
    %p162 = por %p160, %p161
    %s164 = sadd.s32 %s163, 1
    %p167 = scmp.eq.s32.totalorder %s24, 1
    %p168 = scmp.ne.s32.totalorder %s163, %s165
    %p169 = scmp.eq.s32.totalorder %s24, 0
    %p170 = por %p168, %p169
    %p171 = scmp.ne.s32.totalorder %s163, %s165
    %p172 = scmp.eq.s32.totalorder %s29, 1
    %p173 = por %p171, %p172
    %p174 = scmp.ne.s32.totalorder %s165, %s166
    %p175 = scmp.eq.s32.totalorder %s29, 0
    %p176 = por %p174, %p175
    %p177 = scmp.ne.s32.totalorder %s165, %s166
    %p178 = scmp.eq.s32.totalorder %s30, 1
    %p179 = por %p177, %p178
    %p181 = scmp.ne.s32.totalorder %s166, %s180
    %p182 = scmp.eq.s32.totalorder %s30, 0
    %p183 = por %p181, %p182
    %s185 = sadd.s32 %s184, 1
    %p188 = scmp.eq.s32.totalorder %s24, 1
    %p189 = scmp.ne.s32.totalorder %s184, %s186
    %p190 = scmp.eq.s32.totalorder %s24, 0
    %p191 = por %p189, %p190
    %p192 = scmp.ne.s32.totalorder %s184, %s186
    %p193 = scmp.eq.s32.totalorder %s29, 1
    %p194 = por %p192, %p193
    %p195 = scmp.ne.s32.totalorder %s186, %s187
    %p196 = scmp.eq.s32.totalorder %s29, 0
    %p197 = por %p195, %p196
    %p198 = scmp.ne.s32.totalorder %s186, %s187
    %p199 = scmp.eq.s32.totalorder %s30, 1
    %p200 = por %p198, %p199
    %p202 = scmp.ne.s32.totalorder %s187, %s201
    %p203 = scmp.eq.s32.totalorder %s30, 0
    %p204 = por %p202, %p203
    %s206 = sadd.s32 %s205, 1
    %p209 = scmp.eq.s32.totalorder %s24, 1
    %p210 = scmp.ne.s32.totalorder %s205, %s207
    %p211 = scmp.eq.s32.totalorder %s24, 0
    %p212 = por %p210, %p211
    %p213 = scmp.ne.s32.totalorder %s205, %s207
    %p214 = scmp.eq.s32.totalorder %s29, 1
    %p215 = por %p213, %p214
    %p216 = scmp.ne.s32.totalorder %s207, %s208
    %p217 = scmp.eq.s32.totalorder %s29, 0
    %p218 = por %p216, %p217
    %p219 = scmp.ne.s32.totalorder %s207, %s208
    %p220 = scmp.eq.s32.totalorder %s30, 1
    %p221 = por %p219, %p220
    %p223 = scmp.ne.s32.totalorder %s208, %s222
    %p224 = scmp.eq.s32.totalorder %s30, 0
    %p225 = por %p223, %p224
    %s227 = sadd.s32 %s226, 1
    %p230 = scmp.eq.s32.totalorder %s24, 1
    %p231 = scmp.ne.s32.totalorder %s226, %s228
    %p232 = scmp.eq.s32.totalorder %s24, 0
    %p233 = por %p231, %p232
    %p234 = scmp.ne.s32.totalorder %s226, %s228
    %p235 = scmp.eq.s32.totalorder %s29, 1
    %p236 = por %p234, %p235
    %p237 = scmp.ne.s32.totalorder %s228, %s229
    %p238 = scmp.eq.s32.totalorder %s29, 0
    %p239 = por %p237, %p238
    %p240 = scmp.ne.s32.totalorder %s228, %s229
    %p241 = scmp.eq.s32.totalorder %s30, 1
    %p242 = por %p240, %p241
    %p244 = scmp.ne.s32.totalorder %s229, %s243
    %p245 = scmp.eq.s32.totalorder %s30, 0
    %p246 = por %p244, %p245
    %s248 = sadd.s32 %s247, 1
    %p251 = scmp.eq.s32.totalorder %s24, 1
    %p252 = scmp.ne.s32.totalorder %s247, %s249
    %p253 = scmp.eq.s32.totalorder %s24, 0
    %p254 = por %p252, %p253
    %p255 = scmp.ne.s32.totalorder %s247, %s249
    %p256 = scmp.eq.s32.totalorder %s29, 1
    %p257 = por %p255, %p256
    %p258 = scmp.ne.s32.totalorder %s249, %s250
    %p259 = scmp.eq.s32.totalorder %s29, 0
    %p260 = por %p258, %p259
    %p261 = scmp.ne.s32.totalorder %s249, %s250
    %p262 = scmp.eq.s32.totalorder %s30, 1
    %p263 = por %p261, %p262
    %p265 = scmp.ne.s32.totalorder %s250, %s264
    %p266 = scmp.eq.s32.totalorder %s30, 0
    %p267 = por %p265, %p266
    %s269 = sadd.s32 %s268, 1
    %p272 = scmp.eq.s32.totalorder %s24, 1
    %p273 = scmp.ne.s32.totalorder %s268, %s270
    %p274 = scmp.eq.s32.totalorder %s24, 0
    %p275 = por %p273, %p274
    %p276 = scmp.ne.s32.totalorder %s268, %s270
    %p277 = scmp.eq.s32.totalorder %s29, 1
    %p278 = por %p276, %p277
    %p279 = scmp.ne.s32.totalorder %s270, %s271
    %p280 = scmp.eq.s32.totalorder %s29, 0
    %p281 = por %p279, %p280
    %p282 = scmp.ne.s32.totalorder %s270, %s271
    %p283 = scmp.eq.s32.totalorder %s30, 1
    %p284 = por %p282, %p283
    %p286 = scmp.ne.s32.totalorder %s271, %s285
    %p287 = scmp.eq.s32.totalorder %s30, 0
    %p288 = por %p286, %p287
    %s290 = sadd.s32 %s289, 1
    %p293 = scmp.eq.s32.totalorder %s24, 1
    %p294 = scmp.ne.s32.totalorder %s289, %s291
    %p295 = scmp.eq.s32.totalorder %s24, 0
    %p296 = por %p294, %p295
    %p297 = scmp.ne.s32.totalorder %s289, %s291
    %p298 = scmp.eq.s32.totalorder %s29, 1
    %p299 = por %p297, %p298
    %p300 = scmp.ne.s32.totalorder %s291, %s292
    %p301 = scmp.eq.s32.totalorder %s29, 0
    %p302 = por %p300, %p301
    %p303 = scmp.ne.s32.totalorder %s291, %s292
    %p304 = scmp.eq.s32.totalorder %s30, 1
    %p305 = por %p303, %p304
    %p307 = scmp.ne.s32.totalorder %s292, %s306
    %p308 = scmp.eq.s32.totalorder %s30, 0
    %p309 = por %p307, %p308
    %s311 = sadd.s32 %s310, 1
    %p314 = scmp.eq.s32.totalorder %s24, 1
    %p315 = scmp.ne.s32.totalorder %s310, %s312
    %p316 = scmp.eq.s32.totalorder %s24, 0
    %p317 = por %p315, %p316
    %p318 = scmp.ne.s32.totalorder %s310, %s312
    %p319 = scmp.eq.s32.totalorder %s29, 1
    %p320 = por %p318, %p319
    %p321 = scmp.ne.s32.totalorder %s312, %s313
    %p322 = scmp.eq.s32.totalorder %s29, 0
    %p323 = por %p321, %p322
    %p324 = scmp.ne.s32.totalorder %s312, %s313
    %p325 = scmp.eq.s32.totalorder %s30, 1
    %p326 = por %p324, %p325
    %p328 = scmp.ne.s32.totalorder %s313, %s327
    %p329 = scmp.eq.s32.totalorder %s30, 0
    %p330 = por %p328, %p329
    %s332 = sadd.s32 %s331, 1
    %p335 = scmp.eq.s32.totalorder %s24, 1
    %p336 = scmp.ne.s32.totalorder %s331, %s333
    %p337 = scmp.eq.s32.totalorder %s24, 0
    %p338 = por %p336, %p337
    %p339 = scmp.ne.s32.totalorder %s331, %s333
    %p340 = scmp.eq.s32.totalorder %s29, 1
    %p341 = por %p339, %p340
    %p342 = scmp.ne.s32.totalorder %s333, %s334
    %p343 = scmp.eq.s32.totalorder %s29, 0
    %p344 = por %p342, %p343
    %p345 = scmp.ne.s32.totalorder %s333, %s334
    %p346 = scmp.eq.s32.totalorder %s30, 1
    %p347 = por %p345, %p346
    %p349 = scmp.ne.s32.totalorder %s334, %s348
    %p350 = scmp.eq.s32.totalorder %s30, 0
    %p351 = por %p349, %p350
    %s353 = sadd.s32 %s352, 1
    %p356 = scmp.eq.s32.totalorder %s24, 1
    %p357 = scmp.ne.s32.totalorder %s352, %s354
    %p358 = scmp.eq.s32.totalorder %s24, 0
    %p359 = por %p357, %p358
    %p360 = scmp.ne.s32.totalorder %s352, %s354
    %p361 = scmp.eq.s32.totalorder %s29, 1
    %p362 = por %p360, %p361
    %p363 = scmp.ne.s32.totalorder %s354, %s355
    %p364 = scmp.eq.s32.totalorder %s29, 0
    %p365 = por %p363, %p364
    %p366 = scmp.ne.s32.totalorder %s354, %s355
    %p367 = scmp.eq.s32.totalorder %s30, 1
    %p368 = por %p366, %p367
    %p370 = scmp.ne.s32.totalorder %s355, %s369
    %p371 = scmp.eq.s32.totalorder %s30, 0
    %p372 = por %p370, %p371
    %s374 = sadd.s32 %s373, 1
    %p377 = scmp.eq.s32.totalorder %s24, 1
    %p378 = scmp.ne.s32.totalorder %s373, %s375
    %p379 = scmp.eq.s32.totalorder %s24, 0
    %p380 = por %p378, %p379
    %p381 = scmp.ne.s32.totalorder %s373, %s375
    %p382 = scmp.eq.s32.totalorder %s29, 1
    %p383 = por %p381, %p382
    %p384 = scmp.ne.s32.totalorder %s375, %s376
    %p385 = scmp.eq.s32.totalorder %s29, 0
    %p386 = por %p384, %p385
    %p387 = scmp.ne.s32.totalorder %s375, %s376
    %p388 = scmp.eq.s32.totalorder %s30, 1
    %p389 = por %p387, %p388
    %p391 = scmp.ne.s32.totalorder %s376, %s390
    %p392 = scmp.eq.s32.totalorder %s30, 0
    %p393 = por %p391, %p392
    %s395 = sadd.s32 %s394, 1
    %p398 = scmp.eq.s32.totalorder %s24, 1
    %p399 = scmp.ne.s32.totalorder %s394, %s396
    %p400 = scmp.eq.s32.totalorder %s24, 0
    %p401 = por %p399, %p400
    %p402 = scmp.ne.s32.totalorder %s394, %s396
    %p403 = scmp.eq.s32.totalorder %s29, 1
    %p404 = por %p402, %p403
    %p405 = scmp.ne.s32.totalorder %s396, %s397
    %p406 = scmp.eq.s32.totalorder %s29, 0
    %p407 = por %p405, %p406
    %p408 = scmp.ne.s32.totalorder %s396, %s397
    %p409 = scmp.eq.s32.totalorder %s30, 1
    %p410 = por %p408, %p409
    %p412 = scmp.ne.s32.totalorder %s397, %s411
    %p413 = scmp.eq.s32.totalorder %s30, 0
    %p414 = por %p412, %p413
    %s415 = ssub.s32 %s24, %s31
    %p416 = scmp.eq.s32.totalorder %s415, 0
    %s418 = sadd.s32 %s417, 1
    %s419 = scalar_select %p416, %s417, %s418
    %p422 = pneg %p416
    %p423 = scmp.eq.s32.totalorder %s24, 1
    %p424 = por %p422, %p423
    %p425 = scmp.ne.s32.totalorder %s417, %s420
    %p426 = scmp.eq.s32.totalorder %s24, 0
    %p427 = por %p425, %p426
    %p428 = scmp.ne.s32.totalorder %s417, %s420
    %p429 = scmp.eq.s32.totalorder %s29, 1
    %p430 = por %p428, %p429
    %p431 = scmp.ne.s32.totalorder %s420, %s421
    %p432 = scmp.eq.s32.totalorder %s29, 0
    %p433 = por %p431, %p432
    %p434 = scmp.ne.s32.totalorder %s420, %s421
    %p435 = scmp.eq.s32.totalorder %s30, 1
    %p436 = por %p434, %p435
    %p438 = scmp.ne.s32.totalorder %s421, %s437
    %p439 = scmp.eq.s32.totalorder %s30, 0
    %p440 = por %p438, %p439
    %p441 = scmp.le.s32.totalorder 1, %s24
    %p442 = scmp.lt.s32.totalorder %s24, 3
    %p443 = pnand %p441, %p442
    %p444 = pneg %p443
    // Predicated region
    $region9: #{gpt_forward.3} parent=5 // pred_check
      _
    $region10: #{gpt_forward.3} parent=5 // pred_check_branch
      %446 = sbr.rel (%p443) target = $region12
    $region11: #{gpt_forward.3} parent=5 // pred_region
      %s447 = ssub.s32 %s24, 1
      // Predicated region
      $region13: #{gpt_forward.3} parent=11 // pred_check
        %p448 = pneg %p71
      $region14: #{gpt_forward.3} parent=11 // pred_check_branch
        %450 = sbr.rel (%p448) target = $region16
      $region15: #{gpt_forward.3} parent=11 // pred_region
        _
      $region16: #{gpt_forward.3} parent=11 // pred_fallthru
        _
      // Predicated region
      $region17: #{gpt_forward.3} parent=11 // pred_check
        %p451 = pneg %p92
      $region18: #{gpt_forward.3} parent=11 // pred_check_branch
        %453 = sbr.rel (%p451) target = $region20
      $region19: #{gpt_forward.3} parent=11 // pred_region
        _
      $region20: #{gpt_forward.3} parent=11 // pred_fallthru
        _
      // Predicated region
      $region21: #{gpt_forward.3} parent=11 // pred_check
        %p454 = pneg %p113
      $region22: #{gpt_forward.3} parent=11 // pred_check_branch
        %456 = sbr.rel (%p454) target = $region24
      $region23: #{gpt_forward.3} parent=11 // pred_region
        _
      $region24: #{gpt_forward.3} parent=11 // pred_fallthru
        _
      // Predicated region
      $region25: #{gpt_forward.3} parent=11 // pred_check
        %p457 = pneg %p134
      $region26: #{gpt_forward.3} parent=11 // pred_check_branch
        %459 = sbr.rel (%p457) target = $region28
      $region27: #{gpt_forward.3} parent=11 // pred_region
        _
      $region28: #{gpt_forward.3} parent=11 // pred_fallthru
        _
      // Predicated region
      $region29: #{gpt_forward.3} parent=11 // pred_check
        %p460 = pneg %p155
      $region30: #{gpt_forward.3} parent=11 // pred_check_branch
        %462 = sbr.rel (%p460) target = $region32
      $region31: #{gpt_forward.3} parent=11 // pred_region
        _
      $region32: #{gpt_forward.3} parent=11 // pred_fallthru
        _
      // Predicated region
      $region33: #{gpt_forward.3} parent=11 // pred_check
        %p463 = pneg %p176
      $region34: #{gpt_forward.3} parent=11 // pred_check_branch
        %465 = sbr.rel (%p463) target = $region36
      $region35: #{gpt_forward.3} parent=11 // pred_region
        _
      $region36: #{gpt_forward.3} parent=11 // pred_fallthru
        _
      // Predicated region
      $region37: #{gpt_forward.3} parent=11 // pred_check
        %p466 = pneg %p197
      $region38: #{gpt_forward.3} parent=11 // pred_check_branch
        %468 = sbr.rel (%p466) target = $region40
      $region39: #{gpt_forward.3} parent=11 // pred_region
        _
      $region40: #{gpt_forward.3} parent=11 // pred_fallthru
        _
      // Predicated region
      $region41: #{gpt_forward.3} parent=11 // pred_check
        %p469 = pneg %p218
      $region42: #{gpt_forward.3} parent=11 // pred_check_branch
        %471 = sbr.rel (%p469) target = $region44
      $region43: #{gpt_forward.3} parent=11 // pred_region
        _
      $region44: #{gpt_forward.3} parent=11 // pred_fallthru
        _
      // Predicated region
      $region45: #{gpt_forward.3} parent=11 // pred_check
        %p472 = pneg %p239
      $region46: #{gpt_forward.3} parent=11 // pred_check_branch
        %474 = sbr.rel (%p472) target = $region48
      $region47: #{gpt_forward.3} parent=11 // pred_region
        _
      $region48: #{gpt_forward.3} parent=11 // pred_fallthru
        _
      // Predicated region
      $region49: #{gpt_forward.3} parent=11 // pred_check
        %p475 = pneg %p260
      $region50: #{gpt_forward.3} parent=11 // pred_check_branch
        %477 = sbr.rel (%p475) target = $region52
      $region51: #{gpt_forward.3} parent=11 // pred_region
        _
      $region52: #{gpt_forward.3} parent=11 // pred_fallthru
        _
      // Predicated region
      $region53: #{gpt_forward.3} parent=11 // pred_check
        %p478 = pneg %p281
      $region54: #{gpt_forward.3} parent=11 // pred_check_branch
        %480 = sbr.rel (%p478) target = $region56
      $region55: #{gpt_forward.3} parent=11 // pred_region
        _
      $region56: #{gpt_forward.3} parent=11 // pred_fallthru
        _
      // Predicated region
      $region57: #{gpt_forward.3} parent=11 // pred_check
        %p481 = pneg %p302
      $region58: #{gpt_forward.3} parent=11 // pred_check_branch
        %483 = sbr.rel (%p481) target = $region60
      $region59: #{gpt_forward.3} parent=11 // pred_region
        _
      $region60: #{gpt_forward.3} parent=11 // pred_fallthru
        _
      // Predicated region
      $region61: #{gpt_forward.3} parent=11 // pred_check
        %p484 = pneg %p323
      $region62: #{gpt_forward.3} parent=11 // pred_check_branch
        %486 = sbr.rel (%p484) target = $region64
      $region63: #{gpt_forward.3} parent=11 // pred_region
        _
      $region64: #{gpt_forward.3} parent=11 // pred_fallthru
        _
      // Predicated region
      $region65: #{gpt_forward.3} parent=11 // pred_check
        %p487 = pneg %p344
      $region66: #{gpt_forward.3} parent=11 // pred_check_branch
        %489 = sbr.rel (%p487) target = $region68
      $region67: #{gpt_forward.3} parent=11 // pred_region
        _
      $region68: #{gpt_forward.3} parent=11 // pred_fallthru
        _
      // Predicated region
      $region69: #{gpt_forward.3} parent=11 // pred_check
        %p490 = pneg %p365
      $region70: #{gpt_forward.3} parent=11 // pred_check_branch
        %492 = sbr.rel (%p490) target = $region72
      $region71: #{gpt_forward.3} parent=11 // pred_region
        _
      $region72: #{gpt_forward.3} parent=11 // pred_fallthru
        _
      // Predicated region
      $region73: #{gpt_forward.3} parent=11 // pred_check
        %p493 = pneg %p386
      $region74: #{gpt_forward.3} parent=11 // pred_check_branch
        %495 = sbr.rel (%p493) target = $region76
      $region75: #{gpt_forward.3} parent=11 // pred_region
        _
      $region76: #{gpt_forward.3} parent=11 // pred_fallthru
        _
      // Predicated region
      $region77: #{gpt_forward.3} parent=11 // pred_check
        %p496 = pneg %p407
      $region78: #{gpt_forward.3} parent=11 // pred_check_branch
        %498 = sbr.rel (%p496) target = $region80
      $region79: #{gpt_forward.3} parent=11 // pred_region
        _
      $region80: #{gpt_forward.3} parent=11 // pred_fallthru
        _
    $region12: #{gpt_forward.3} parent=5 // pred_fallthru
      _
    %p499 = scmp.lt.s32.totalorder %s24, 2
    // Predicated region
    $region81: #{gpt_forward.3} parent=5 // pred_check
      %p500 = pneg %p499
    $region82: #{gpt_forward.3} parent=5 // pred_check_branch
      %502 = sbr.rel (%p500) target = $region84
    $region83: #{gpt_forward.3} parent=5 // pred_region
      // Predicated region
      $region85: #{gpt_forward.3} parent=83 // pred_check
        %p503 = pneg %p44
      $region86: #{gpt_forward.3} parent=83 // pred_check_branch
        %505 = sbr.rel (%p503) target = $region88
      $region87: #{gpt_forward.3} parent=83 // pred_region
        %p506 = scmp.lt.s32.totalorder %s24, 1
        %s507 = scalar_select %p506, %s24, 1
        %s508 = smul.addr %s507, 8
        %s509 = scalar_lea.vmem %s0, %s508
      $region88: #{gpt_forward.3} parent=83 // pred_fallthru
        _
    $region84: #{gpt_forward.3} parent=5 // pred_fallthru
      _
    %p510 = scmp.le.s32.totalorder 1, %s24
    %p511 = scmp.lt.s32.totalorder %s24, 3
    %p512 = pnand %p510, %p511
    %p513 = pneg %p512
    // Predicated region
    $region89: #{gpt_forward.3} parent=5 // pred_check
      _
    $region90: #{gpt_forward.3} parent=5 // pred_check_branch
      %515 = sbr.rel (%p512) target = $region92
    $region91: #{gpt_forward.3} parent=5 // pred_region
      %s516 = ssub.s32 %s24, 1
      %p517 = scmp.lt.s32.totalorder %s29, 1
      %s518 = scalar_select %p517, %s29, 1
      %s519 = smul.addr %s518, 8
      %s520 = scalar_lea.vmem %s0, %s519
      %p521 = pneg %p50
      %p522 = pneg %p47
      %p523 = pneg %p71
      %p524 = pneg %p68
      %p525 = pneg %p92
      %p526 = pneg %p89
      %p527 = pneg %p113
      %p528 = pneg %p110
      %p529 = pneg %p134
      %p530 = pneg %p131
      %p531 = pneg %p155
      %p532 = pneg %p152
      %p533 = pneg %p176
      %p534 = pneg %p173
      %p535 = pneg %p197
      %p536 = pneg %p194
      %p537 = pneg %p218
      %p538 = pneg %p215
      %p539 = pneg %p239
      %p540 = pneg %p236
      %p541 = pneg %p260
      %p542 = pneg %p257
      %p543 = pneg %p281
      %p544 = pneg %p278
      %p545 = pneg %p302
      %p546 = pneg %p299
      %p547 = pneg %p323
      %p548 = pneg %p320
      %p549 = pneg %p344
      %p550 = pneg %p341
      %p551 = pneg %p365
      %p552 = pneg %p362
      %p553 = pneg %p386
      %p554 = pneg %p383
      %p555 = pneg %p407
      %p556 = pneg %p404
      %p557 = pneg %p433
      %p558 = pneg %p430
      %p559 = scmp.lt.s32.totalorder %s29, 1
      %s560 = scalar_select %p559, %s29, 1
      %s561 = smul.addr %s560, 8
      %s562 = scalar_lea.vmem %s18, %s561
      %p563 = scmp.lt.s32.totalorder %s29, 1
      %s564 = scalar_select %p563, %s29, 1
      %s565 = smul.addr %s564, 8
      %s566 = scalar_lea.vmem %s0, %s565
      %p567 = scmp.lt.s32.totalorder %s29, 1
      %s568 = scalar_select %p567, %s29, 1
      %s569 = smul.addr %s568, 8
      %s570 = scalar_lea.vmem %s18, %s569
      %v572 = vld [vmem:[%s566] sm:$0xff]
      %v573 = vld [vmem:[%s5] sm:$0x1]
      %v574 = vld [vmem:[%s6] sm:$0x1]
      %vm575 = vcmask 523264
      %v576 = vsel %vm575, %v572, 0.0
      %577 = vadd.xlane.f32.xlu0 %v576
      %v578 = vpop.xlane.xlu0 %577
      %v579 = vrcp.pop 64.0
      %v580 = vmul.f32 %v578, %v579
      %v581 = vsub.f32 %v572, %v580
      %v582 = vmul.f32 %v581, %v581
      %v583 = vsel %vm575, %v582, 0.0
      %584 = vadd.xlane.f32.xlu0 %v583
      %v585 = vpop.xlane.xlu0 %584
      %v586 = vmul.f32 %v585, %v579
      %v587 = vadd.f32 %v586, 1e-05
      %v588 = vrsqrt.pop %v587
      %v589 = vmul.f32 %v581, %v588
      %v591 = vlaneseq
      %v592 = vshrl.u32 %v591, 7
      %v593 = vsub.s32 0, %v592
      %v594 = vrot.slane %v573, %v593
      %v596 = vmul.f32 %v589, %v594
      %v598 = vlaneseq
      %v599 = vshrl.u32 %v598, 7
      %v600 = vsub.s32 0, %v599
      %v601 = vrot.slane %v574, %v600
      %v603 = vadd.f32 %v596, %v601
      %v604 = vrot.slane %v603, 7
      %v605 = vld [vmem:[%s2] sm:$0xff]
      %607 = vset.pattern.permute.xlu0 0
      %608 = vperm.xlu0 %607, %v605
      %v609 = vpop.permute.xlu0 %608
      %v611 = vmul.f32 %v604, %v609
      %v612 = vld [vmem:[%s3] sm:$0x1]
      %v614 = vlaneseq
      %v615 = vshrl.u32 %v614, 7
      %v616 = vsub.s32 0, %v615
      %v617 = vrot.slane %v612, %v616
      %v619 = vmul.f32 %v611, %v617
      %v620 = vld [vmem:[%s4] sm:$0x1]
      %v622 = vlaneseq
      %v623 = vshrl.u32 %v622, 7
      %v624 = vsub.s32 0, %v623
      %v625 = vrot.slane %v620, %v624
      %v627 = vmul.f32 %v603, %v625
      %v628 = vadd.f32 %v619, %v627
      %v629 = vpack.c.bf16 %v628, %v628
      %v630 = vld [vmem:[%s7] sm:$0xff]
      %v631 = vld [vmem:[%s7 + $0x8] sm:$0xff]
      %v632 = vld [vmem:[%s7 + $0x10] sm:$0xff]
      %v633 = vld [vmem:[%s7 + $0x18] sm:$0xff]
      %v634 = vld [vmem:[%s7 + $0x20] sm:$0xff]
      %v635 = vld [vmem:[%s7 + $0x28] sm:$0xff]
      %v636 = vld [vmem:[%s7 + $0x30] sm:$0xff]
      %v637 = vld [vmem:[%s7 + $0x38] sm:$0xff]
      %v638 = vld [vmem:[%s8] sm:$0x3]
      %v640 = vlaneseq
      %v641 = vshrl.u32 %v640, 7
      %v642 = vsub.s32 0, %v641
      %v643 = vrot.slane %v638, %v642
      %v644 = vlaneseq
      %v645 = vshrl.u32 %v644, 7
      %v646 = vsub.s32 1, %v645
      %v647 = vrot.slane %v638, %v646
      %v658 = vunpack.c.l.b16 %v630
      %v659 = vunpack.c.h.b16 %v630
      %v660 = vunpack.c.l.b16 %v631
      %v661 = vunpack.c.h.b16 %v631
      %v662 = vunpack.c.l.b16 %v632
      %v663 = vunpack.c.h.b16 %v632
      %v664 = vunpack.c.l.b16 %v633
      %v665 = vunpack.c.h.b16 %v633
      %v666 = vunpack.c.l.b16 %v634
      %v667 = vunpack.c.h.b16 %v634
      %v668 = vunpack.c.l.b16 %v635
      %v669 = vunpack.c.h.b16 %v635
      %v670 = vunpack.c.l.b16 %v636
      %v671 = vunpack.c.h.b16 %v636
      %v672 = vunpack.c.l.b16 %v637
      %v673 = vunpack.c.h.b16 %v637
      %v674 = vpack.c.b16 %v660, %v658
      %v675 = vpack.c.b16 %v661, %v659
      %v676 = vpack.c.b16 %v664, %v662
      %v677 = vpack.c.b16 %v665, %v663
      %v678 = vpack.c.b16 %v668, %v666
      %v679 = vpack.c.b16 %v669, %v667
      %v680 = vpack.c.b16 %v672, %v670
      %v681 = vpack.c.b16 %v673, %v671
      %v691 = vsel %vm575, %v629, 0
      %693 = vmatprep.subr.bf16.mxu0 %v675
      %694 = vmatpush1.bf16.msra.mxu0 %v674
      %695 = vmatprep.subr.bf16.mxu0 %v677
      %696 = vmatpush1.bf16.msra.mxu0 %v676
      %697 = vmatprep.subr.bf16.mxu0 %v679
      %698 = vmatpush1.bf16.msra.mxu0 %v678
      %699 = vmatprep.subr.bf16.mxu0 %v681
      %700 = vmatpush1.bf16.msra.mxu0 %v680
      %701 = vmatprep.subr.bf16.mxu0 0
      %702 = vmatpush1.bf16.msra.mxu0 0
      %703 = vmatprep.subr.bf16.mxu0 0
      %704 = vmatpush1.bf16.msra.mxu0 0
      %705 = vmatprep.subr.bf16.mxu0 0
      %706 = vmatpush1.bf16.msra.mxu0 0
      %707 = vmatprep.subr.bf16.mxu0 0
      %708 = vmatpush1.bf16.msra.mxu0 0
      %709 = vmatprep.subr.bf16.mxu0 0
      %710 = vmatpush1.bf16.msra.mxu0 0
      %711 = vmatprep.subr.bf16.mxu0 0
      %712 = vmatpush1.bf16.msra.mxu0 0
      %713 = vmatprep.subr.bf16.mxu0 0
      %714 = vmatpush1.bf16.msra.mxu0 0
      %715 = vmatprep.subr.bf16.mxu0 0
      %716 = vmatpush1.bf16.msra.mxu0 0
      %717 = vmatprep.subr.bf16.mxu0 0
      %718 = vmatpush1.bf16.msra.mxu0 0
      %719 = vmatprep.subr.bf16.mxu0 0
      %720 = vmatpush1.bf16.msra.mxu0 0
      %721 = vmatprep.subr.bf16.mxu0 0
      %722 = vmatpush1.bf16.msra.mxu0 0
      %723 = vmatprep.subr.bf16.mxu0 0
      %724 = vmatpush1.bf16.msra.mxu0 0
      %725 = vmatprep.mubr.bf16.mxu0 0
      %726 = vmatmul.mubr.bf16.gmra.mrb[0].mxu0 %v691
      %v727 = vpop.f32.mrb[0].mxu0
      %v728 = vadd.f32 %v643, %v727
      %v729 = vpop.f32.mrb[0].mxu0
      %v730 = vadd.f32 %v647, %v729
      %v731 = vpop.f32.mrb[0].mxu0
      %v732 = vpop.f32.mrb[0].mxu0
      %733 = vdwg.mxu0
      %735 = vrot.lane.b32.xlu0 %v728, 112
      %v736 = vpop.permute.xlu0 %735
      %738 = vrot.lane.b32.xlu0 %v728, 96
      %v739 = vpop.permute.xlu0 %738
      %741 = vrot.lane.b32.xlu0 %v728, 80
      %v742 = vpop.permute.xlu0 %741
      %v744 = vpack.c.bf16 %v728, %v728
      %v745 = vpack.c.bf16 %v736, %v736
      %v746 = vpack.c.bf16 %v739, %v739
      %v747 = vpack.c.bf16 %v742, %v742
      %749 = vrot.lane.b32.xlu0 %v730, 112
      %v750 = vpop.permute.xlu0 %749
      %752 = vrot.lane.b32.xlu0 %v730, 96
      %v753 = vpop.permute.xlu0 %752
      %755 = vrot.lane.b32.xlu0 %v730, 80
      %v756 = vpop.permute.xlu0 %755
      %v758 = vpack.c.bf16 %v730, %v730
      %v759 = vpack.c.bf16 %v750, %v750
      %v760 = vpack.c.bf16 %v753, %v753
      %v761 = vpack.c.bf16 %v756, %v756
      %v762 = vld [vmem:[%s1] sm:$0xff]
      %764 = vrot.lane.b32.xlu0 %v744, 64
      %v765 = vpop.permute.xlu0 %764
      %vm766 = vcmask 130048
      %v768 = vsel %vm766, %v744, 0
      %v771 = vsel %vm766, %v765, 0
      %773 = vmatprep.subr.bf16.mxu0 0
      %774 = vmatpush1.bf16.xpose.msra.mxu0 %v771
      %775 = vmatprep.subr.bf16.mxu0 0
      %776 = vmatpush1.bf16.xpose.msra.mxu0 0
      %777 = vmatprep.subr.bf16.mxu0 0
      %778 = vmatpush1.bf16.xpose.msra.mxu0 0
      %779 = vmatprep.subr.bf16.mxu0 0
      %780 = vmatpush1.bf16.xpose.msra.mxu0 0
      %781 = vmatprep.subr.bf16.mxu0 0
      %782 = vmatpush1.bf16.xpose.msra.mxu0 0
      %783 = vmatprep.subr.bf16.mxu0 0
      %784 = vmatpush1.bf16.xpose.msra.mxu0 0
      %785 = vmatprep.subr.bf16.mxu0 0
      %786 = vmatpush1.bf16.xpose.msra.mxu0 0
      %787 = vmatprep.subr.bf16.mxu0 0
      %788 = vmatpush1.bf16.xpose.msra.mxu0 0
      %789 = vmatprep.subr.bf16.mxu0 0
      %790 = vmatpush1.bf16.xpose.msra.mxu0 0
      %791 = vmatprep.subr.bf16.mxu0 0
      %792 = vmatpush1.bf16.xpose.msra.mxu0 0
      %793 = vmatprep.subr.bf16.mxu0 0
      %794 = vmatpush1.bf16.xpose.msra.mxu0 0
      %795 = vmatprep.subr.bf16.mxu0 0
      %796 = vmatpush1.bf16.xpose.msra.mxu0 0
      %797 = vmatprep.subr.bf16.mxu0 0
      %798 = vmatpush1.bf16.xpose.msra.mxu0 0
      %799 = vmatprep.subr.bf16.mxu0 0
      %800 = vmatpush1.bf16.xpose.msra.mxu0 0
      %801 = vmatprep.subr.bf16.mxu0 0
      %802 = vmatpush1.bf16.xpose.msra.mxu0 0
      %803 = vmatprep.subr.bf16.mxu0 0
      %804 = vmatpush1.bf16.xpose.msra.mxu0 0
      %805 = vmatprep.mubr.bf16.mxu0 0
      %806 = vmatmul.mubr.bf16.gmra.mrb[0].mxu0 %v768
      %v807 = vpop.f32.mrb[0].mxu0
      %v808 = vadd.f32 %v762, %v807
      %v809 = vpop.f32.mrb[0].mxu0
      %v810 = vpop.f32.mrb[0].mxu0
      %v811 = vpop.f32.mrb[0].mxu0
      %812 = vdwg.mxu0
      %814 = vrot.lane.b32.xlu0 %v745, 64
      %v815 = vpop.permute.xlu0 %814
      %v817 = vsel %vm766, %v745, 0
      %v820 = vsel %vm766, %v815, 0
      %822 = vmatprep.subr.bf16.mxu0 0
      %823 = vmatpush1.bf16.xpose.msra.mxu0 %v820
      %824 = vmatprep.subr.bf16.mxu0 0
      %825 = vmatpush1.bf16.xpose.msra.mxu0 0
      %826 = vmatprep.subr.bf16.mxu0 0
      %827 = vmatpush1.bf16.xpose.msra.mxu0 0
      %828 = vmatprep.subr.bf16.mxu0 0
      %829 = vmatpush1.bf16.xpose.msra.mxu0 0
      %830 = vmatprep.subr.bf16.mxu0 0
      %831 = vmatpush1.bf16.xpose.msra.mxu0 0
      %832 = vmatprep.subr.bf16.mxu0 0
      %833 = vmatpush1.bf16.xpose.msra.mxu0 0
      %834 = vmatprep.subr.bf16.mxu0 0
      %835 = vmatpush1.bf16.xpose.msra.mxu0 0
      %836 = vmatprep.subr.bf16.mxu0 0
      %837 = vmatpush1.bf16.xpose.msra.mxu0 0
      %838 = vmatprep.subr.bf16.mxu0 0
      %839 = vmatpush1.bf16.xpose.msra.mxu0 0
      %840 = vmatprep.subr.bf16.mxu0 0
      %841 = vmatpush1.bf16.xpose.msra.mxu0 0
      %842 = vmatprep.subr.bf16.mxu0 0
      %843 = vmatpush1.bf16.xpose.msra.mxu0 0
      %844 = vmatprep.subr.bf16.mxu0 0
      %845 = vmatpush1.bf16.xpose.msra.mxu0 0
      %846 = vmatprep.subr.bf16.mxu0 0
      %847 = vmatpush1.bf16.xpose.msra.mxu0 0
      %848 = vmatprep.subr.bf16.mxu0 0
      %849 = vmatpush1.bf16.xpose.msra.mxu0 0
      %850 = vmatprep.subr.bf16.mxu0 0
      %851 = vmatpush1.bf16.xpose.msra.mxu0 0
      %852 = vmatprep.subr.bf16.mxu0 0
      %853 = vmatpush1.bf16.xpose.msra.mxu0 0
      %854 = vmatprep.mubr.bf16.mxu0 0
      %855 = vmatmul.mubr.bf16.gmra.mrb[0].mxu0 %v817
      %v856 = vpop.f32.mrb[0].mxu0
      %v857 = vadd.f32 %v762, %v856
      %v858 = vpop.f32.mrb[0].mxu0
      %v859 = vpop.f32.mrb[0].mxu0
      %v860 = vpop.f32.mrb[0].mxu0
      %861 = vdwg.mxu0
      %863 = vrot.lane.b32.xlu0 %v746, 64
      %v864 = vpop.permute.xlu0 %863
      %v866 = vsel %vm766, %v746, 0
      %v869 = vsel %vm766, %v864, 0
      %871 = vmatprep.subr.bf16.mxu0 0
      %872 = vmatpush1.bf16.xpose.msra.mxu0 %v869
      %873 = vmatprep.subr.bf16.mxu0 0
      %874 = vmatpush1.bf16.xpose.msra.mxu0 0
      %875 = vmatprep.subr.bf16.mxu0 0
      %876 = vmatpush1.bf16.xpose.msra.mxu0 0
      %877 = vmatprep.subr.bf16.mxu0 0
      %878 = vmatpush1.bf16.xpose.msra.mxu0 0
      %879 = vmatprep.subr.bf16.mxu0 0
      %880 = vmatpush1.bf16.xpose.msra.mxu0 0
      %881 = vmatprep.subr.bf16.mxu0 0
      %882 = vmatpush1.bf16.xpose.msra.mxu0 0
      %883 = vmatprep.subr.bf16.mxu0 0
      %884 = vmatpush1.bf16.xpose.msra.mxu0 0
      %885 = vmatprep.subr.bf16.mxu0 0
      %886 = vmatpush1.bf16.xpose.msra.mxu0 0
      %887 = vmatprep.subr.bf16.mxu0 0
      %888 = vmatpush1.bf16.xpose.msra.mxu0 0
      %889 = vmatprep.subr.bf16.mxu0 0
      %890 = vmatpush1.bf16.xpose.msra.mxu0 0
      %891 = vmatprep.subr.bf16.mxu0 0
      %892 = vmatpush1.bf16.xpose.msra.mxu0 0
      %893 = vmatprep.subr.bf16.mxu0 0
      %894 = vmatpush1.bf16.xpose.msra.mxu0 0
      %895 = vmatprep.subr.bf16.mxu0 0
      %896 = vmatpush1.bf16.xpose.msra.mxu0 0
      %897 = vmatprep.subr.bf16.mxu0 0
      %898 = vmatpush1.bf16.xpose.msra.mxu0 0
      %899 = vmatprep.subr.bf16.mxu0 0
      %900 = vmatpush1.bf16.xpose.msra.mxu0 0
      %901 = vmatprep.subr.bf16.mxu0 0
      %902 = vmatpush1.bf16.xpose.msra.mxu0 0
      %903 = vmatprep.mubr.bf16.mxu0 0
      %904 = vmatmul.mubr.bf16.gmra.mrb[0].mxu0 %v866
      %v905 = vpop.f32.mrb[0].mxu0
      %v906 = vadd.f32 %v762, %v905
      %v907 = vpop.f32.mrb[0].mxu0
      %v908 = vpop.f32.mrb[0].mxu0
      %v909 = vpop.f32.mrb[0].mxu0
      %910 = vdwg.mxu0
      %912 = vrot.lane.b32.xlu0 %v747, 64
      %v913 = vpop.permute.xlu0 %912
      %v915 = vsel %vm766, %v747, 0
      %v918 = vsel %vm766, %v913, 0
      %920 = vmatprep.subr.bf16.mxu0 0
      %921 = vmatpush1.bf16.xpose.msra.mxu0 %v918
      %922 = vmatprep.subr.bf16.mxu0 0
      %923 = vmatpush1.bf16.xpose.msra.mxu0 0
      %924 = vmatprep.subr.bf16.mxu0 0
      %925 = vmatpush1.bf16.xpose.msra.mxu0 0
      %926 = vmatprep.subr.bf16.mxu0 0
      %927 = vmatpush1.bf16.xpose.msra.mxu0 0
      %928 = vmatprep.subr.bf16.mxu0 0
      %929 = vmatpush1.bf16.xpose.msra.mxu0 0
      %930 = vmatprep.subr.bf16.mxu0 0
      %931 = vmatpush1.bf16.xpose.msra.mxu0 0
      %932 = vmatprep.subr.bf16.mxu0 0
      %933 = vmatpush1.bf16.xpose.msra.mxu0 0
      %934 = vmatprep.subr.bf16.mxu0 0
      %935 = vmatpush1.bf16.xpose.msra.mxu0 0
      %936 = vmatprep.subr.bf16.mxu0 0
      %937 = vmatpush1.bf16.xpose.msra.mxu0 0
      %938 = vmatprep.subr.bf16.mxu0 0
      %939 = vmatpush1.bf16.xpose.msra.mxu0 0
      %940 = vmatprep.subr.bf16.mxu0 0
      %941 = vmatpush1.bf16.xpose.msra.mxu0 0
      %942 = vmatprep.subr.bf16.mxu0 0
      %943 = vmatpush1.bf16.xpose.msra.mxu0 0
      %944 = vmatprep.subr.bf16.mxu0 0
      %945 = vmatpush1.bf16.xpose.msra.mxu0 0
      %946 = vmatprep.subr.bf16.mxu0 0
      %947 = vmatpush1.bf16.xpose.msra.mxu0 0
      %948 = vmatprep.subr.bf16.mxu0 0
      %949 = vmatpush1.bf16.xpose.msra.mxu0 0
      %950 = vmatprep.subr.bf16.mxu0 0
      %951 = vmatpush1.bf16.xpose.msra.mxu0 0
      %952 = vmatprep.mubr.bf16.mxu0 0
      %953 = vmatmul.mubr.bf16.gmra.mrb[0].mxu0 %v915
      %v954 = vpop.f32.mrb[0].mxu0
      %v955 = vadd.f32 %v762, %v954
      %v956 = vpop.f32.mrb[0].mxu0
      %v957 = vpop.f32.mrb[0].mxu0
      %v958 = vpop.f32.mrb[0].mxu0
      %959 = vdwg.mxu0
      %vm960 = vcmask 64512
      %v961 = vsel %vm960, %v808, -inf
      %962 = vmax.xlane.f32.xlu0 %v961
      %v963 = vpop.xlane.xlu0 %962
      %v964 = vsel %vm960, %v857, -inf
      %965 = vmax.xlane.f32.xlu0 %v964
      %v966 = vpop.xlane.xlu0 %965
      %v967 = vsel %vm960, %v906, -inf
      %968 = vmax.xlane.f32.xlu0 %v967
      %v969 = vpop.xlane.xlu0 %968
      %v970 = vsel %vm960, %v955, -inf
      %971 = vmax.xlane.f32.xlu0 %v970
      %v972 = vpop.xlane.xlu0 %971
      %v973 = vsub.f32 %v808, %v963
      %v974 = vsub.f32 %v857, %v966
      %v975 = vsub.f32 %v906, %v969
      %v976 = vsub.f32 %v955, %v972
      %v977 = vmul.f32 %v973, 1.442695
      %v978 = vpow.pop %v977
      %v979 = vmul.f32 %v974, 1.442695
      %v980 = vpow.pop %v979
      %v981 = vmul.f32 %v975, 1.442695
      %v982 = vpow.pop %v981
      %v983 = vmul.f32 %v976, 1.442695
      %v984 = vpow.pop %v983
      %v985 = vsel %vm960, %v978, 0.0
      %986 = vadd.xlane.f32.xlu0 %v985
      %v987 = vpop.xlane.xlu0 %986
      %v988 = vsel %vm960, %v980, 0.0
      %989 = vadd.xlane.f32.xlu0 %v988
      %v990 = vpop.xlane.xlu0 %989
      %v991 = vsel %vm960, %v982, 0.0
      %992 = vadd.xlane.f32.xlu0 %v991
      %v993 = vpop.xlane.xlu0 %992
      %v994 = vsel %vm960, %v984, 0.0
      %995 = vadd.xlane.f32.xlu0 %v994
      %v996 = vpop.xlane.xlu0 %995
      %v997 = vrcp.pop %v987
      %v998 = vrcp.pop %v990
      %v999 = vrcp.pop %v993
      %v1000 = vrcp.pop %v996
      %v1001 = vmul.f32 %v978, %v997
      %v1002 = vmul.f32 %v980, %v998
      %v1003 = vmul.f32 %v982, %v999
      %v1004 = vmul.f32 %v984, %v1000
      %v1005 = vpack.c.bf16 %v1001, %v1001
      %v1006 = vpack.c.bf16 %v1002, %v1002
      %v1007 = vpack.c.bf16 %v1003, %v1003
      %v1008 = vpack.c.bf16 %v1004, %v1004
      %v1009 = vld [vmem:[%s11] sm:$0xf]
      %v1010 = vld [vmem:[%s11 + $0x4] sm:$0xf]
      %v1011 = vld [vmem:[%s11 + $0x8] sm:$0xf]
      %v1012 = vld [vmem:[%s11 + $0xc] sm:$0xf]
      %v1013 = vmul.bf16 %v1005, %v1009
      %v1014 = vmul.bf16 %v1006, %v1010
      %v1015 = vmul.bf16 %v1007, %v1011
      %v1016 = vmul.bf16 %v1008, %v1012
      %v1018 = vsel %vm960, %v1013, 0
      %vm1020 = vcmask 1043456
      %v1022 = vsel %vm1020, %v758, 0
      %1024 = vmatprep.subr.bf16.mxu0 0
      %1025 = vmatpush1.bf16.msra.mxu0 %v1022
      %1026 = vmatprep.subr.bf16.mxu0 0
      %1027 = vmatpush1.bf16.msra.mxu0 0
      %1028 = vmatprep.subr.bf16.mxu0 0
      %1029 = vmatpush1.bf16.msra.mxu0 0
      %1030 = vmatprep.subr.bf16.mxu0 0
      %1031 = vmatpush1.bf16.msra.mxu0 0
      %1032 = vmatprep.subr.bf16.mxu0 0
      %1033 = vmatpush1.bf16.msra.mxu0 0
      %1034 = vmatprep.subr.bf16.mxu0 0
      %1035 = vmatpush1.bf16.msra.mxu0 0
      %1036 = vmatprep.subr.bf16.mxu0 0
      %1037 = vmatpush1.bf16.msra.mxu0 0
      %1038 = vmatprep.subr.bf16.mxu0 0
      %1039 = vmatpush1.bf16.msra.mxu0 0
      %1040 = vmatprep.subr.bf16.mxu0 0
      %1041 = vmatpush1.bf16.msra.mxu0 0
      %1042 = vmatprep.subr.bf16.mxu0 0
      %1043 = vmatpush1.bf16.msra.mxu0 0
      %1044 = vmatprep.subr.bf16.mxu0 0
      %1045 = vmatpush1.bf16.msra.mxu0 0
      %1046 = vmatprep.subr.bf16.mxu0 0
      %1047 = vmatpush1.bf16.msra.mxu0 0
      %1048 = vmatprep.subr.bf16.mxu0 0
      %1049 = vmatpush1.bf16.msra.mxu0 0
      %1050 = vmatprep.subr.bf16.mxu0 0
      %1051 = vmatpush1.bf16.msra.mxu0 0
      %1052 = vmatprep.subr.bf16.mxu0 0
      %1053 = vmatpush1.bf16.msra.mxu0 0
      %1054 = vmatprep.subr.bf16.mxu0 0
      %1055 = vmatpush1.bf16.msra.mxu0 0
      %1056 = vmatprep.mubr.bf16.mxu0 0
      %1057 = vmatmul.mubr.bf16.gmra.mrb[0].mxu0 %v1018
      %v1058 = vpop.f32.mrb[0].mxu0
      %v1059 = vadd.f32 0.0, %v1058
      %v1060 = vpop.f32.mrb[0].mxu0
      %v1061 = vpop.f32.mrb[0].mxu0
      %v1062 = vpop.f32.mrb[0].mxu0
      %1063 = vdwg.mxu0
      %v1065 = vsel %vm960, %v1014, 0
      %v1068 = vsel %vm1020, %v759, 0
      %1070 = vmatprep.subr.bf16.mxu0 0
      %1071 = vmatpush1.bf16.msra.mxu0 %v1068
      %1072 = vmatprep.subr.bf16.mxu0 0
      %1073 = vmatpush1.bf16.msra.mxu0 0
      %1074 = vmatprep.subr.bf16.mxu0 0
      %1075 = vmatpush1.bf16.msra.mxu0 0
      %1076 = vmatprep.subr.bf16.mxu0 0
      %1077 = vmatpush1.bf16.msra.mxu0 0
      %1078 = vmatprep.subr.bf16.mxu0 0
      %1079 = vmatpush1.bf16.msra.mxu0 0
      %1080 = vmatprep.subr.bf16.mxu0 0
      %1081 = vmatpush1.bf16.msra.mxu0 0
      %1082 = vmatprep.subr.bf16.mxu0 0
      %1083 = vmatpush1.bf16.msra.mxu0 0
      %1084 = vmatprep.subr.bf16.mxu0 0
      %1085 = vmatpush1.bf16.msra.mxu0 0
      %1086 = vmatprep.subr.bf16.mxu0 0
      %1087 = vmatpush1.bf16.msra.mxu0 0
      %1088 = vmatprep.subr.bf16.mxu0 0
      %1089 = vmatpush1.bf16.msra.mxu0 0
      %1090 = vmatprep.subr.bf16.mxu0 0
      %1091 = vmatpush1.bf16.msra.mxu0 0
      %1092 = vmatprep.subr.bf16.mxu0 0
      %1093 = vmatpush1.bf16.msra.mxu0 0
      %1094 = vmatprep.subr.bf16.mxu0 0
      %1095 = vmatpush1.bf16.msra.mxu0 0
      %1096 = vmatprep.subr.bf16.mxu0 0
      %1097 = vmatpush1.bf16.msra.mxu0 0
      %1098 = vmatprep.subr.bf16.mxu0 0
      %1099 = vmatpush1.bf16.msra.mxu0 0
      %1100 = vmatprep.subr.bf16.mxu0 0
      %1101 = vmatpush1.bf16.msra.mxu0 0
      %1102 = vmatprep.mubr.bf16.mxu0 0
      %1103 = vmatmul.mubr.bf16.gmra.mrb[0].mxu0 %v1065
      %v1104 = vpop.f32.mrb[0].mxu0
      %v1105 = vadd.f32 0.0, %v1104
      %v1106 = vpop.f32.mrb[0].mxu0
      %v1107 = vpop.f32.mrb[0].mxu0
      %v1108 = vpop.f32.mrb[0].mxu0
      %1109 = vdwg.mxu0
      %v1111 = vsel %vm960, %v1015, 0
      %v1114 = vsel %vm1020, %v760, 0
      %1116 = vmatprep.subr.bf16.mxu0 0
      %1117 = vmatpush1.bf16.msra.mxu0 %v1114
      %1118 = vmatprep.subr.bf16.mxu0 0
      %1119 = vmatpush1.bf16.msra.mxu0 0
      %1120 = vmatprep.subr.bf16.mxu0 0
      %1121 = vmatpush1.bf16.msra.mxu0 0
      %1122 = vmatprep.subr.bf16.mxu0 0
      %1123 = vmatpush1.bf16.msra.mxu0 0
      %1124 = vmatprep.subr.bf16.mxu0 0
      %1125 = vmatpush1.bf16.msra.mxu0 0
      %1126 = vmatprep.subr.bf16.mxu0 0
      %1127 = vmatpush1.bf16.msra.mxu0 0
      %1128 = vmatprep.subr.bf16.mxu0 0
      %1129 = vmatpush1.bf16.msra.mxu0 0
      %1130 = vmatprep.subr.bf16.mxu0 0
      %1131 = vmatpush1.bf16.msra.mxu0 0
      %1132 = vmatprep.subr.bf16.mxu0 0
      %1133 = vmatpush1.bf16.msra.mxu0 0
      %1134 = vmatprep.subr.bf16.mxu0 0
      %1135 = vmatpush1.bf16.msra.mxu0 0
      %1136 = vmatprep.subr.bf16.mxu0 0
      %1137 = vmatpush1.bf16.msra.mxu0 0
      %1138 = vmatprep.subr.bf16.mxu0 0
      %1139 = vmatpush1.bf16.msra.mxu0 0
      %1140 = vmatprep.subr.bf16.mxu0 0
      %1141 = vmatpush1.bf16.msra.mxu0 0
      %1142 = vmatprep.subr.bf16.mxu0 0
      %1143 = vmatpush1.bf16.msra.mxu0 0
      %1144 = vmatprep.subr.bf16.mxu0 0
      %1145 = vmatpush1.bf16.msra.mxu0 0
      %1146 = vmatprep.subr.bf16.mxu0 0
      %1147 = vmatpush1.bf16.msra.mxu0 0
      %1148 = vmatprep.mubr.bf16.mxu0 0
      %1149 = vmatmul.mubr.bf16.gmra.mrb[0].mxu0 %v1111
      %v1150 = vpop.f32.mrb[0].mxu0
      %v1151 = vadd.f32 0.0, %v1150
      %v1152 = vpop.f32.mrb[0].mxu0
      %v1153 = vpop.f32.mrb[0].mxu0
      %v1154 = vpop.f32.mrb[0].mxu0
      %1155 = vdwg.mxu0
      %v1157 = vsel %vm960, %v1016, 0
      %v1160 = vsel %vm1020, %v761, 0
      %1162 = vmatprep.subr.bf16.mxu0 0
      %1163 = vmatpush1.bf16.msra.mxu0 %v1160
      %1164 = vmatprep.subr.bf16.mxu0 0
      %1165 = vmatpush1.bf16.msra.mxu0 0
      %1166 = vmatprep.subr.bf16.mxu0 0
      %1167 = vmatpush1.bf16.msra.mxu0 0
      %1168 = vmatprep.subr.bf16.mxu0 0
      %1169 = vmatpush1.bf16.msra.mxu0 0
      %1170 = vmatprep.subr.bf16.mxu0 0
      %1171 = vmatpush1.bf16.msra.mxu0 0
      %1172 = vmatprep.subr.bf16.mxu0 0
      %1173 = vmatpush1.bf16.msra.mxu0 0
      %1174 = vmatprep.subr.bf16.mxu0 0
      %1175 = vmatpush1.bf16.msra.mxu0 0
      %1176 = vmatprep.subr.bf16.mxu0 0
      %1177 = vmatpush1.bf16.msra.mxu0 0
      %1178 = vmatprep.subr.bf16.mxu0 0
      %1179 = vmatpush1.bf16.msra.mxu0 0
      %1180 = vmatprep.subr.bf16.mxu0 0
      %1181 = vmatpush1.bf16.msra.mxu0 0
      %1182 = vmatprep.subr.bf16.mxu0 0
      %1183 = vmatpush1.bf16.msra.mxu0 0
      %1184 = vmatprep.subr.bf16.mxu0 0
      %1185 = vmatpush1.bf16.msra.mxu0 0
      %1186 = vmatprep.subr.bf16.mxu0 0
      %1187 = vmatpush1.bf16.msra.mxu0 0
      %1188 = vmatprep.subr.bf16.mxu0 0
      %1189 = vmatpush1.bf16.msra.mxu0 0
      %1190 = vmatprep.subr.bf16.mxu0 0
      %1191 = vmatpush1.bf16.msra.mxu0 0
      %1192 = vmatprep.subr.bf16.mxu0 0
      %1193 = vmatpush1.bf16.msra.mxu0 0
      %1194 = vmatprep.mubr.bf16.mxu0 0
      %1195 = vmatmul.mubr.bf16.gmra.mrb[0].mxu0 %v1157
      %v1196 = vpop.f32.mrb[0].mxu0
      %v1197 = vadd.f32 0.0, %v1196
      %v1198 = vpop.f32.mrb[0].mxu0
      %v1199 = vpop.f32.mrb[0].mxu0
      %v1200 = vpop.f32.mrb[0].mxu0
      %1201 = vdwg.mxu0
      %1203 = vrot.lane.b32.xlu0 %v1105, 16
      %v1204 = vpop.permute.xlu0 %1203
      %1207 = vrot.lane.b32.xlu0 %v1151, 32
      %v1208 = vpop.permute.xlu0 %1207
      %1211 = vrot.lane.b32.xlu0 %v1197, 48
      %v1212 = vpop.permute.xlu0 %1211
      %v1214 = vsel %vm766, %v1059, %v1204
      %vm1215 = vcmask 261120
      %v1216 = vsel %vm1215, %v1214, %v1208
      %vm1217 = vcmask 392192
      %v1218 = vsel %vm1217, %v1216, %v1212
      %v1219 = vpack.c.bf16 %v1218, %v1218
      %v1220 = vld [vmem:[%s9] sm:$0xf]
      %v1221 = vld [vmem:[%s9 + $0x4] sm:$0xf]
      %v1222 = vld [vmem:[%s9 + $0x8] sm:$0xf]
      %v1223 = vld [vmem:[%s9 + $0xc] sm:$0xf]
      %v1224 = vld [vmem:[%s9 + $0x10] sm:$0xf]
      %v1225 = vld [vmem:[%s9 + $0x14] sm:$0xf]
      %v1226 = vld [vmem:[%s9 + $0x18] sm:$0xf]
      %v1227 = vld [vmem:[%s9 + $0x1c] sm:$0xf]
      %v1228 = vld [vmem:[%s10] sm:$0x1]
      %v1230 = vlaneseq
      %v1231 = vshrl.u32 %v1230, 7
      %v1232 = vsub.s32 0, %v1231
      %v1233 = vrot.slane %v1228, %v1232
      %v1243 = vunpack.c.l.b16 %v1220
      %v1244 = vunpack.c.l.b16 %v1221
      %v1245 = vunpack.c.l.b16 %v1222
      %v1246 = vunpack.c.l.b16 %v1223
      %v1247 = vunpack.c.l.b16 %v1224
      %v1248 = vunpack.c.l.b16 %v1225
      %v1249 = vunpack.c.l.b16 %v1226
      %v1250 = vunpack.c.l.b16 %v1227
      %v1251 = vpack.c.b16 %v1244, %v1243
      %v1252 = vpack.c.b16 %v1246, %v1245
      %v1253 = vpack.c.b16 %v1248, %v1247
      %v1254 = vpack.c.b16 %v1250, %v1249
      %v1260 = vsel %vm575, %v1219, 0
      %1262 = vmatprep.subr.bf16.mxu0 0
      %1263 = vmatpush1.bf16.msra.mxu0 %v1251
      %1264 = vmatprep.subr.bf16.mxu0 0
      %1265 = vmatpush1.bf16.msra.mxu0 %v1252
      %1266 = vmatprep.subr.bf16.mxu0 0
      %1267 = vmatpush1.bf16.msra.mxu0 %v1253
      %1268 = vmatprep.subr.bf16.mxu0 0
      %1269 = vmatpush1.bf16.msra.mxu0 %v1254
      %1270 = vmatprep.subr.bf16.mxu0 0
      %1271 = vmatpush1.bf16.msra.mxu0 0
      %1272 = vmatprep.subr.bf16.mxu0 0
      %1273 = vmatpush1.bf16.msra.mxu0 0
      %1274 = vmatprep.subr.bf16.mxu0 0
      %1275 = vmatpush1.bf16.msra.mxu0 0
      %1276 = vmatprep.subr.bf16.mxu0 0
      %1277 = vmatpush1.bf16.msra.mxu0 0
      %1278 = vmatprep.subr.bf16.mxu0 0
      %1279 = vmatpush1.bf16.msra.mxu0 0
      %1280 = vmatprep.subr.bf16.mxu0 0
      %1281 = vmatpush1.bf16.msra.mxu0 0
      %1282 = vmatprep.subr.bf16.mxu0 0
      %1283 = vmatpush1.bf16.msra.mxu0 0
      %1284 = vmatprep.subr.bf16.mxu0 0
      %1285 = vmatpush1.bf16.msra.mxu0 0
      %1286 = vmatprep.subr.bf16.mxu0 0
      %1287 = vmatpush1.bf16.msra.mxu0 0
      %1288 = vmatprep.subr.bf16.mxu0 0
      %1289 = vmatpush1.bf16.msra.mxu0 0
      %1290 = vmatprep.subr.bf16.mxu0 0
      %1291 = vmatpush1.bf16.msra.mxu0 0
      %1292 = vmatprep.subr.bf16.mxu0 0
      %1293 = vmatpush1.bf16.msra.mxu0 0
      %1294 = vmatprep.mubr.bf16.mxu0 0
      %1295 = vmatmul.mubr.bf16.gmra.mrb[0].mxu0 %v1260
      %v1296 = vpop.f32.mrb[0].mxu0
      %v1297 = vadd.f32 %v1233, %v1296
      %v1298 = vpop.f32.mrb[0].mxu0
      %v1299 = vpop.f32.mrb[0].mxu0
      %v1300 = vpop.f32.mrb[0].mxu0
      %1301 = vdwg.mxu0
      %v1302 = vadd.f32 %v572, %v1297
      %v1303 = vld [vmem:[%s12] sm:$0x1]
      %v1304 = vld [vmem:[%s13] sm:$0x1]
      %v1305 = vsel %vm575, %v1302, 0.0
      %1306 = vadd.xlane.f32.xlu0 %v1305
      %v1307 = vpop.xlane.xlu0 %1306
      %v1308 = vmul.f32 %v1307, %v579
      %v1309 = vsub.f32 %v1302, %v1308
      %v1310 = vmul.f32 %v1309, %v1309
      %v1311 = vsel %vm575, %v1310, 0.0
      %1312 = vadd.xlane.f32.xlu0 %v1311
      %v1313 = vpop.xlane.xlu0 %1312
      %v1314 = vmul.f32 %v1313, %v579
      %v1315 = vadd.f32 %v1314, 1e-05
      %v1316 = vrsqrt.pop %v1315
      %v1317 = vmul.f32 %v1309, %v1316
      %v1319 = vlaneseq
      %v1320 = vshrl.u32 %v1319, 7
      %v1321 = vsub.s32 0, %v1320
      %v1322 = vrot.slane %v1303, %v1321
      %v1324 = vmul.f32 %v1317, %v1322
      %v1326 = vlaneseq
      %v1327 = vshrl.u32 %v1326, 7
      %v1328 = vsub.s32 0, %v1327
      %v1329 = vrot.slane %v1304, %v1328
      %v1331 = vadd.f32 %v1324, %v1329
      %v1332 = vpack.c.bf16 %v1331, %v1331
      %v1333 = vld [vmem:[%s14] sm:$0xff]
      %v1334 = vld [vmem:[%s14 + $0x8] sm:$0xff]
      %v1335 = vld [vmem:[%s14 + $0x10] sm:$0xff]
      %v1336 = vld [vmem:[%s14 + $0x18] sm:$0xff]
      %v1337 = vld [vmem:[%s14 + $0x20] sm:$0xff]
      %v1338 = vld [vmem:[%s14 + $0x28] sm:$0xff]
      %v1339 = vld [vmem:[%s14 + $0x30] sm:$0xff]
      %v1340 = vld [vmem:[%s14 + $0x38] sm:$0xff]
      %v1341 = vld [vmem:[%s15] sm:$0x3]
      %v1343 = vlaneseq
      %v1344 = vshrl.u32 %v1343, 7
      %v1345 = vsub.s32 0, %v1344
      %v1346 = vrot.slane %v1341, %v1345
      %v1347 = vlaneseq
      %v1348 = vshrl.u32 %v1347, 7
      %v1349 = vsub.s32 1, %v1348
      %v1350 = vrot.slane %v1341, %v1349
      %v1361 = vunpack.c.l.b16 %v1333
      %v1362 = vunpack.c.h.b16 %v1333
      %v1363 = vunpack.c.l.b16 %v1334
      %v1364 = vunpack.c.h.b16 %v1334
      %v1365 = vunpack.c.l.b16 %v1335
      %v1366 = vunpack.c.h.b16 %v1335
      %v1367 = vunpack.c.l.b16 %v1336
      %v1368 = vunpack.c.h.b16 %v1336
      %v1369 = vunpack.c.l.b16 %v1337
      %v1370 = vunpack.c.h.b16 %v1337
      %v1371 = vunpack.c.l.b16 %v1338
      %v1372 = vunpack.c.h.b16 %v1338
      %v1373 = vunpack.c.l.b16 %v1339
      %v1374 = vunpack.c.h.b16 %v1339
      %v1375 = vunpack.c.l.b16 %v1340
      %v1376 = vunpack.c.h.b16 %v1340
      %v1377 = vpack.c.b16 %v1363, %v1361
      %v1378 = vpack.c.b16 %v1364, %v1362
      %v1379 = vpack.c.b16 %v1367, %v1365
      %v1380 = vpack.c.b16 %v1368, %v1366
      %v1381 = vpack.c.b16 %v1371, %v1369
      %v1382 = vpack.c.b16 %v1372, %v1370
      %v1383 = vpack.c.b16 %v1375, %v1373
      %v1384 = vpack.c.b16 %v1376, %v1374
      %v1394 = vsel %vm575, %v1332, 0
      %1396 = vmatprep.subr.bf16.mxu0 %v1378
      %1397 = vmatpush1.bf16.msra.mxu0 %v1377
      %1398 = vmatprep.subr.bf16.mxu0 %v1380
      %1399 = vmatpush1.bf16.msra.mxu0 %v1379
      %1400 = vmatprep.subr.bf16.mxu0 %v1382
      %1401 = vmatpush1.bf16.msra.mxu0 %v1381
      %1402 = vmatprep.subr.bf16.mxu0 %v1384
      %1403 = vmatpush1.bf16.msra.mxu0 %v1383
      %1404 = vmatprep.subr.bf16.mxu0 0
      %1405 = vmatpush1.bf16.msra.mxu0 0
      %1406 = vmatprep.subr.bf16.mxu0 0
      %1407 = vmatpush1.bf16.msra.mxu0 0
      %1408 = vmatprep.subr.bf16.mxu0 0
      %1409 = vmatpush1.bf16.msra.mxu0 0
      %1410 = vmatprep.subr.bf16.mxu0 0
      %1411 = vmatpush1.bf16.msra.mxu0 0
      %1412 = vmatprep.subr.bf16.mxu0 0
      %1413 = vmatpush1.bf16.msra.mxu0 0
      %1414 = vmatprep.subr.bf16.mxu0 0
      %1415 = vmatpush1.bf16.msra.mxu0 0
      %1416 = vmatprep.subr.bf16.mxu0 0
      %1417 = vmatpush1.bf16.msra.mxu0 0
      %1418 = vmatprep.subr.bf16.mxu0 0
      %1419 = vmatpush1.bf16.msra.mxu0 0
      %1420 = vmatprep.subr.bf16.mxu0 0
      %1421 = vmatpush1.bf16.msra.mxu0 0
      %1422 = vmatprep.subr.bf16.mxu0 0
      %1423 = vmatpush1.bf16.msra.mxu0 0
      %1424 = vmatprep.subr.bf16.mxu0 0
      %1425 = vmatpush1.bf16.msra.mxu0 0
      %1426 = vmatprep.subr.bf16.mxu0 0
      %1427 = vmatpush1.bf16.msra.mxu0 0
      %1428 = vmatprep.mubr.bf16.mxu0 0
      %1429 = vmatmul.mubr.bf16.gmra.mrb[0].mxu0 %v1394
      %v1430 = vpop.f32.mrb[0].mxu0
      %v1431 = vadd.f32 %v1346, %v1430
      %v1432 = vpop.f32.mrb[0].mxu0
      %v1433 = vadd.f32 %v1350, %v1432
      %v1434 = vpop.f32.mrb[0].mxu0
      %v1435 = vpop.f32.mrb[0].mxu0
      %1436 = vdwg.mxu0
      %v1437 = vmul.f32 %v1431, 0.5
      %v1438 = vmul.f32 %v1433, 0.5
      %v1439 = vmul.f32 %v1431, 0.044715
      %v1440 = vmul.f32 %v1433, 0.044715
      %v1441 = vmul.f32 %v1439, %v1431
      %v1442 = vmul.f32 %v1440, %v1433
      %v1443 = vmul.f32 %v1441, %v1431
      %v1444 = vmul.f32 %v1442, %v1433
      %v1445 = vadd.f32 %v1431, %v1443
      %v1446 = vadd.f32 %v1433, %v1444
      %v1447 = vmul.f32 %v1445, 0.7978846
      %v1448 = vmul.f32 %v1446, 0.7978846
      %v1449 = vtanh.pop %v1447
      %v1450 = vtanh.pop %v1448
      %v1451 = vadd.f32 %v1449, 1.0
      %v1452 = vadd.f32 %v1450, 1.0
      %v1453 = vmul.f32 %v1437, %v1451
      %v1454 = vmul.f32 %v1438, %v1452
      %v1455 = vpack.c.bf16 %v1453, %v1453
      %v1456 = vpack.c.bf16 %v1454, %v1454
      %v1457 = vld [vmem:[%s16] sm:$0xf]
      %v1458 = vld [vmem:[%s16 + $0x4] sm:$0xf]
      %v1459 = vld [vmem:[%s16 + $0x8] sm:$0xf]
      %v1460 = vld [vmem:[%s16 + $0xc] sm:$0xf]
      %v1461 = vld [vmem:[%s16 + $0x10] sm:$0xf]
      %v1462 = vld [vmem:[%s16 + $0x14] sm:$0xf]
      %v1463 = vld [vmem:[%s16 + $0x18] sm:$0xf]
      %v1464 = vld [vmem:[%s16 + $0x1c] sm:$0xf]
      %v1465 = vld [vmem:[%s16 + $0x20] sm:$0xf]
      %v1466 = vld [vmem:[%s16 + $0x24] sm:$0xf]
      %v1467 = vld [vmem:[%s16 + $0x28] sm:$0xf]
      %v1468 = vld [vmem:[%s16 + $0x2c] sm:$0xf]
      %v1469 = vld [vmem:[%s16 + $0x30] sm:$0xf]
      %v1470 = vld [vmem:[%s16 + $0x34] sm:$0xf]
      %v1471 = vld [vmem:[%s16 + $0x38] sm:$0xf]
      %v1472 = vld [vmem:[%s16 + $0x3c] sm:$0xf]
      %v1473 = vld [vmem:[%s16 + $0x40] sm:$0xf]
      %v1474 = vld [vmem:[%s16 + $0x44] sm:$0xf]
      %v1475 = vld [vmem:[%s16 + $0x48] sm:$0xf]
      %v1476 = vld [vmem:[%s16 + $0x4c] sm:$0xf]
      %v1477 = vld [vmem:[%s16 + $0x50] sm:$0xf]
      %v1478 = vld [vmem:[%s16 + $0x54] sm:$0xf]
      %v1479 = vld [vmem:[%s16 + $0x58] sm:$0xf]
      %v1480 = vld [vmem:[%s16 + $0x5c] sm:$0xf]
      %v1481 = vld [vmem:[%s16 + $0x60] sm:$0xf]
      %v1482 = vld [vmem:[%s16 + $0x64] sm:$0xf]
      %v1483 = vld [vmem:[%s16 + $0x68] sm:$0xf]
      %v1484 = vld [vmem:[%s16 + $0x6c] sm:$0xf]
      %v1485 = vld [vmem:[%s16 + $0x70] sm:$0xf]
      %v1486 = vld [vmem:[%s16 + $0x74] sm:$0xf]
      %v1487 = vld [vmem:[%s16 + $0x78] sm:$0xf]
      %v1488 = vld [vmem:[%s16 + $0x7c] sm:$0xf]
      %v1489 = vld [vmem:[%s17] sm:$0x1]
      %v1491 = vlaneseq
      %v1492 = vshrl.u32 %v1491, 7
      %v1493 = vsub.s32 0, %v1492
      %v1494 = vrot.slane %v1489, %v1493
      %v1528 = vunpack.c.l.b16 %v1457
      %v1529 = vunpack.c.l.b16 %v1458
      %v1530 = vunpack.c.l.b16 %v1459
      %v1531 = vunpack.c.l.b16 %v1460
      %v1532 = vunpack.c.l.b16 %v1461
      %v1533 = vunpack.c.l.b16 %v1462
      %v1534 = vunpack.c.l.b16 %v1463
      %v1535 = vunpack.c.l.b16 %v1464
      %v1536 = vunpack.c.l.b16 %v1465
      %v1537 = vunpack.c.l.b16 %v1466
      %v1538 = vunpack.c.l.b16 %v1467
      %v1539 = vunpack.c.l.b16 %v1468
      %v1540 = vunpack.c.l.b16 %v1469
      %v1541 = vunpack.c.l.b16 %v1470
      %v1542 = vunpack.c.l.b16 %v1471
      %v1543 = vunpack.c.l.b16 %v1472
      %v1544 = vunpack.c.l.b16 %v1473
      %v1545 = vunpack.c.l.b16 %v1474
      %v1546 = vunpack.c.l.b16 %v1475
      %v1547 = vunpack.c.l.b16 %v1476
      %v1548 = vunpack.c.l.b16 %v1477
      %v1549 = vunpack.c.l.b16 %v1478
      %v1550 = vunpack.c.l.b16 %v1479
      %v1551 = vunpack.c.l.b16 %v1480
      %v1552 = vunpack.c.l.b16 %v1481
      %v1553 = vunpack.c.l.b16 %v1482
      %v1554 = vunpack.c.l.b16 %v1483
      %v1555 = vunpack.c.l.b16 %v1484
      %v1556 = vunpack.c.l.b16 %v1485
      %v1557 = vunpack.c.l.b16 %v1486
      %v1558 = vunpack.c.l.b16 %v1487
      %v1559 = vunpack.c.l.b16 %v1488
      %v1560 = vpack.c.b16 %v1529, %v1528
      %v1561 = vpack.c.b16 %v1531, %v1530
      %v1562 = vpack.c.b16 %v1533, %v1532
      %v1563 = vpack.c.b16 %v1535, %v1534
      %v1564 = vpack.c.b16 %v1537, %v1536
      %v1565 = vpack.c.b16 %v1539, %v1538
      %v1566 = vpack.c.b16 %v1541, %v1540
      %v1567 = vpack.c.b16 %v1543, %v1542
      %v1568 = vpack.c.b16 %v1545, %v1544
      %v1569 = vpack.c.b16 %v1547, %v1546
      %v1570 = vpack.c.b16 %v1549, %v1548
      %v1571 = vpack.c.b16 %v1551, %v1550
      %v1572 = vpack.c.b16 %v1553, %v1552
      %v1573 = vpack.c.b16 %v1555, %v1554
      %v1574 = vpack.c.b16 %v1557, %v1556
      %v1575 = vpack.c.b16 %v1559, %v1558
      %1592 = vmatprep.subr.bf16.mxu0 0
      %1593 = vmatpush1.bf16.msra.mxu0 %v1560
      %1594 = vmatprep.subr.bf16.mxu0 0
      %1595 = vmatpush1.bf16.msra.mxu0 %v1561
      %1596 = vmatprep.subr.bf16.mxu0 0
      %1597 = vmatpush1.bf16.msra.mxu0 %v1562
      %1598 = vmatprep.subr.bf16.mxu0 0
      %1599 = vmatpush1.bf16.msra.mxu0 %v1563
      %1600 = vmatprep.subr.bf16.mxu0 0
      %1601 = vmatpush1.bf16.msra.mxu0 %v1564
      %1602 = vmatprep.subr.bf16.mxu0 0
      %1603 = vmatpush1.bf16.msra.mxu0 %v1565
      %1604 = vmatprep.subr.bf16.mxu0 0
      %1605 = vmatpush1.bf16.msra.mxu0 %v1566
      %1606 = vmatprep.subr.bf16.mxu0 0
      %1607 = vmatpush1.bf16.msra.mxu0 %v1567
      %1608 = vmatprep.subr.bf16.mxu0 0
      %1609 = vmatpush1.bf16.msra.mxu0 %v1568
      %1610 = vmatprep.subr.bf16.mxu0 0
      %1611 = vmatpush1.bf16.msra.mxu0 %v1569
      %1612 = vmatprep.subr.bf16.mxu0 0
      %1613 = vmatpush1.bf16.msra.mxu0 %v1570
      %1614 = vmatprep.subr.bf16.mxu0 0
      %1615 = vmatpush1.bf16.msra.mxu0 %v1571
      %1616 = vmatprep.subr.bf16.mxu0 0
      %1617 = vmatpush1.bf16.msra.mxu0 %v1572
      %1618 = vmatprep.subr.bf16.mxu0 0
      %1619 = vmatpush1.bf16.msra.mxu0 %v1573
      %1620 = vmatprep.subr.bf16.mxu0 0
      %1621 = vmatpush1.bf16.msra.mxu0 %v1574
      %1622 = vmatprep.subr.bf16.mxu0 0
      %1623 = vmatpush1.bf16.msra.mxu0 %v1575
      %1624 = vmatprep.mubr.bf16.mxu0 %v1456
      %1625 = vmatmul.mubr.bf16.gmra.mrb[0].mxu0 %v1455
      %v1626 = vpop.f32.mrb[0].mxu0
      %v1627 = vadd.f32 %v1494, %v1626
      %v1628 = vpop.f32.mrb[0].mxu0
      %v1629 = vpop.f32.mrb[0].mxu0
      %v1630 = vpop.f32.mrb[0].mxu0
      %1631 = vdwg.mxu0
      %v1632 = vadd.f32 %v1302, %v1627
      %1633 = vst.msk [vmem:[%s570] sm:$0xff] %vm575, %v1632
      %p1634 = scmp.lt.s32.totalorder %s29, 1
      %s1635 = scalar_select %p1634, %s29, 1
      %s1636 = smul.addr %s1635, 8
      %s1637 = scalar_lea.vmem %s18, %s1636
      // Predicated region
      $region93: #{gpt_forward.3} parent=91 // pred_check
        %p1638 = pneg %p430
      $region94: #{gpt_forward.3} parent=91 // pred_check_branch
        %1640 = sbr.rel (%p1638) target = $region96
      $region95: #{gpt_forward.3} parent=91 // pred_region
        _
      $region96: #{gpt_forward.3} parent=91 // pred_fallthru
        _
    $region92: #{gpt_forward.3} parent=5 // pred_fallthru
      _
    %p1641 = scmp.le.s32.totalorder 2, %s24
    // Predicated region
    $region97: #{gpt_forward.3} parent=5 // pred_check
      %p1642 = pneg %p1641
    $region98: #{gpt_forward.3} parent=5 // pred_check_branch
      %1644 = sbr.rel (%p1642) target = $region100
    $region99: #{gpt_forward.3} parent=5 // pred_region
      %s1645 = ssub.s32 %s24, 2
      // Predicated region
      $region101: #{gpt_forward.3} parent=99 // pred_check
        %p1646 = pneg %p436
      $region102: #{gpt_forward.3} parent=99 // pred_check_branch
        %1648 = sbr.rel (%p1646) target = $region104
      $region103: #{gpt_forward.3} parent=99 // pred_region
        %p1649 = scmp.lt.s32.totalorder %s30, 1
        %s1650 = scalar_select %p1649, %s30, 1
        %s1651 = smul.addr %s1650, 8
        %s1652 = scalar_lea.vmem %s18, %s1651
      $region104: #{gpt_forward.3} parent=99 // pred_fallthru
        _
    $region100: #{gpt_forward.3} parent=5 // pred_fallthru
      _
  $region6: #{gpt_forward.3} parent=0 // loop_footer
    %s28 = sadd.s32 1, %s24
  $region7: #{gpt_forward.3} parent=0 // loop_footer_branch
    %23 = sbr.rel target = $region3
  $region8: #{gpt_forward.3} parent=0 // loop_exit
    _

</llo_original>
